<compile_context>
chip_gen: v5e
topology: v5e:2x2
jax: 0.10.0
libtpu: 0.0.40
codegen_flags: <defaults>
</compile_context>

<pallas_src>
import functools

import jax
import jax.numpy as jnp
from jax import lax
from jax.experimental import pallas as pl
from jax.experimental.pallas import tpu as pltpu

EPS = 1e-5
MXU_DTYPE = jnp.bfloat16   # matmul operand dtype (accumulation stays f32)


# ---------------------------------------------------------------------------
# wrapper-side weight preparation (static w.r.t. activations)
# ---------------------------------------------------------------------------
def _banded_conv3x3(w, W, out_halo):
    """Banded matmul weights for a 3x3 SAME conv on lane-dense padded rows.

    Activation rows have (W+2)*Cin lanes (lane = wp*Cin + ci, wp the padded
    column; wp=0 / wp=W+1 are a zero halo).  Returns (3, (W+2)*Cin, Wq*Cout)
    such that   out_row[r] = sum_dy padded_row[r + dy] @ M[dy]
    is the conv output row.  Wq = W+2 (zero lane halo baked into the output,
    ready to feed the next conv) if out_halo else W.
    """
    _, _, Cin, Cout = w.shape
    Wq = W + 2 if out_halo else W
    wp = jnp.arange(W + 2)[:, None]                      # padded input column
    wo = jnp.arange(Wq)[None, :]                         # output column block
    wreal = wo - 1 if out_halo else wo                   # real output column
    dx = wp - wreal                                      # 3x3 tap index
    valid = (dx >= 0) & (dx <= 2)
    if out_halo:
        valid = valid & (wreal >= 0) & (wreal <= W - 1)
    dxc = jnp.clip(dx, 0, 2)
    validf = valid[:, :, None, None].astype(w.dtype)
    mats = []
    for dy in range(3):
        g = w[dy][dxc] * validf                          # (W+2, Wq, Cin, Cout)
        g = jnp.transpose(g, (0, 2, 1, 3)).reshape((W + 2) * Cin, Wq * Cout)
        mats.append(g)
    return jnp.stack(mats)


def _shortcut_1x1_block(ws, W):
    """1x1-conv shortcut expressed as extra output columns of the dy=1 banded matrix."""
    Cin, Cout = ws.shape
    pad_eye = jnp.zeros((W + 2, W), ws.dtype).at[1:W + 1, :].set(
        jnp.eye(W, dtype=ws.dtype))
    blk = pad_eye[:, None, :, None] * ws[None, :, None, :]   # (W+2, Cin, W, Cout)
    return blk.reshape((W + 2) * Cin, W * Cout)


# ---------------------------------------------------------------------------
# the fused kernel
# ---------------------------------------------------------------------------
def _fused_kernel(x_ref, m1_ref, m2_ref, p_ref, g1t_ref, b1t_ref, g2t_ref,
                  addt_ref, rm_ref, lm_ref, out_ref, xpad_ref, o1pad_ref,
                  *, B, H, W, Cin, Cout, R, n, use_proj):
    f32 = jnp.float32
    WC1 = (W + 2) * Cout          # conv1 output lanes (with zero W-halo)
    WC2 = W * Cout                # final / shortcut output lanes
    inv_n = 1.0 / float(n)

    # ---- padded input rows: zero halo everywhere, interior = x -------------
    xpad_ref[...] = jnp.zeros_like(xpad_ref)
    o1pad_ref[...] = jnp.zeros_like(o1pad_ref)
    for b in range(B):
        r0 = b * (H + 2)
        xpad_ref[r0 + 1:r0 + 1 + H, Cin:Cin + W * Cin] = x_ref[b]

    # ---- conv1 (+ fused 1x1 shortcut columns): 3 banded MXU matmuls --------
    ncol1 = (WC2 + WC1) if use_proj else WC1
    acc1 = jnp.zeros((R, ncol1), f32)
    for dy in range(3):
        lhs = xpad_ref[dy:dy + R, :].astype(MXU_DTYPE)
        acc1 = acc1 + jnp.dot(lhs, m1_ref[dy], preferred_element_type=f32)
    if use_proj:
        sc = acc1[:, :WC2]        # shortcut (128-lane aligned slice)
        c1 = acc1[:, WC2:]        # conv1 output with zero lane halo
    else:
        sc = None
        c1 = acc1

    rm = rm_ref[...]              # (R, 1)   valid-row mask
    lm = lm_ref[...]              # (1, WC1) interior-lane mask
    m2d = rm * lm                 # hoisted: combined mask (broadcast once)
    p1 = p_ref[...]               # (WC1, WC1) per-channel fold+spread, f32

    # ---- BN1: exact two-pass batch statistics, folded into one fma + ReLU --
    c1m = c1 * rm
    mean1 = jnp.dot(jnp.sum(c1m, axis=0, keepdims=True), p1,
                    preferred_element_type=f32) * inv_n
    d1 = (c1 - mean1) * m2d
    var1 = jnp.dot(jnp.sum(d1 * d1, axis=0, keepdims=True), p1,
                   preferred_element_type=f32) * inv_n
    scale1 = g1t_ref[...] * lax.rsqrt(var1 + EPS)
    o1 = jnp.maximum(d1 * scale1 + b1t_ref[...], 0.0) * m2d
    o1pad_ref[1:R + 1, :] = o1    # rows 0 / R+1 stay zero -> H-padding for conv2

    # ---- conv2: 3 banded MXU matmuls on padded o1 rows ----------------------
    acc2 = jnp.zeros((R, WC2), f32)
    for dy in range(3):
        lhs = o1pad_ref[dy:dy + R, :].astype(MXU_DTYPE)
        acc2 = acc2 + jnp.dot(lhs, m2_ref[dy], preferred_element_type=f32)

    # ---- BN2 + shortcut + ReLU ----------------------------------------------
    p2 = p_ref[0:WC2, 0:WC2]
    c2m = acc2 * rm
    mean2 = jnp.dot(jnp.sum(c2m, axis=0, keepdims=True), p2,
                    preferred_element_type=f32) * inv_n
    d2 = (acc2 - mean2) * rm
    var2 = jnp.dot(jnp.sum(d2 * d2, axis=0, keepdims=True), p2,
                   preferred_element_type=f32) * inv_n
    scale2 = g2t_ref[...] * lax.rsqrt(var2 + EPS)
    pre = d2 * scale2 + addt_ref[...]          # addt = tile(be2 [+ bs])

    for b in range(B):
        r0 = b * (H + 2)
        if use_proj:
            res = pre[r0:r0 + H, :] + sc[r0:r0 + H, :]
        else:
            res = pre[r0:r0 + H, :] + x_ref[b]   # identity shortcut, exact f32
        out_ref[b] = jnp.maximum(res, 0.0)


# ---------------------------------------------------------------------------
# wrapper
# ---------------------------------------------------------------------------
@jax.jit
def residual_block(x_nchw, params):
    """x_nchw: (B, Cin, H, W) f32 -> (B, Cout, H, W) f32."""
    w1, b1, g1, be1, w2, b2, g2, be2, ws, bs = params
    del b1, b2                     # train-mode BatchNorm cancels the conv biases
    B, Cin, H, W = x_nchw.shape
    Cout = w1.shape[-1]
    use_proj = (Cin != Cout)
    R = B * (H + 2)                # flat padded-row count (H rows + 2 pad rows / image)
    n = B * H * W                  # BatchNorm population size
    WC1 = (W + 2) * Cout
    WC2 = W * Cout
    f32 = jnp.float32

    # lane-dense activation rows: x[b, h, w*Cin + c]  (tiny 8 KiB transpose in XLA)
    xrow = jnp.transpose(x_nchw, (0, 2, 3, 1)).reshape(B, H, W * Cin).astype(f32)

    # banded conv weights (bf16 MXU operands); shortcut columns fused into dy=1
    m1_conv = _banded_conv3x3(w1.astype(f32), W, out_halo=True)     # (3, (W+2)Cin, WC1)
    if use_proj:
        sc_blk = _shortcut_1x1_block(ws.astype(f32), W)             # ((W+2)Cin, WC2)
        zeros_blk = jnp.zeros_like(sc_blk)
        m1 = jnp.stack([
            jnp.concatenate(
                [sc_blk if dy == 1 else zeros_blk, m1_conv[dy]], axis=1)
            for dy in range(3)])                                    # (3, ., WC2+WC1)
    else:
        m1 = m1_conv
    m1 = m1.astype(MXU_DTYPE)
    m2 = _banded_conv3x3(w2.astype(f32), W, out_halo=False).astype(MXU_DTYPE)

    # per-channel fold+spread projector: out[j] = sum_i in[i] * [i%Cout == j%Cout]
    idx = jnp.arange(WC1)
    pmat = (idx[:, None] % Cout == idx[None, :] % Cout).astype(f32)

    # masks for the flat padded-row layout
    rr = jnp.arange(R)
    rowmask = ((rr % (H + 2)) < H).astype(f32).reshape(R, 1)
    wq = jnp.arange(WC1) // Cout
    lanemask = ((wq >= 1) & (wq <= W)).astype(f32).reshape(1, WC1)

    # per-channel BN affine params, pre-tiled to the lane-dense layout
    g1t = jnp.tile(g1.astype(f32), W + 2).reshape(1, WC1)
    b1t = jnp.tile(be1.astype(f32), W + 2).reshape(1, WC1)
    g2t = jnp.tile(g2.astype(f32), W).reshape(1, WC2)
    add2 = (be2 + bs) if use_proj else be2
    addt = jnp.tile(add2.astype(f32), W).reshape(1, WC2)

    kernel = functools.partial(_fused_kernel, B=B, H=H, W=W, Cin=Cin,
                               Cout=Cout, R=R, n=n, use_proj=use_proj)
    vmem = pl.BlockSpec(memory_space=pltpu.MemorySpace.VMEM)

    out = pl.pallas_call(
        kernel,
        out_shape=jax.ShapeDtypeStruct((B, H, WC2), f32),
        in_specs=[vmem] * 10,
        out_specs=vmem,
        scratch_shapes=[
            pltpu.VMEM((R + 2, (W + 2) * Cin), f32),   # padded input rows
            pltpu.VMEM((R + 2, WC1), f32),             # padded BN1+ReLU rows
        ],
    )(xrow, m1, m2, pmat, g1t, b1t, g2t, addt, rowmask, lanemask)

    out = out.reshape(B, H, W, Cout)
    return jnp.transpose(out, (0, 3, 1, 2))            # back to NCHW (32 KiB)


# ---------------------------------------------------------------------------
# pure-JAX reference + parameter init + test
# ---------------------------------------------------------------------------
def _batchnorm_train(x, g, b):
    mean = jnp.mean(x, axis=(0, 1, 2), keepdims=True)
    var = jnp.mean((x - mean) ** 2, axis=(0, 1, 2), keepdims=True)
    return (x - mean) * lax.rsqrt(var + EPS) * g + b


def residual_block_reference(x_nchw, params, conv_dtype=jnp.float32):
    w1, b1, g1, be1, w2, b2, g2, be2, ws, bs = params
    in_ch = x_nchw.shape[1]
    out_ch = w1.shape[-1]
    x = jnp.transpose(x_nchw, (0, 2, 3, 1)).astype(jnp.float32)
    dn = ("NHWC", "HWIO", "NHWC")

    def conv(inp, w):
        return lax.conv_general_dilated(
            inp.astype(conv_dtype), w.astype(conv_dtype), (1, 1), "SAME",
            dimension_numbers=dn, preferred_element_type=jnp.float32)

    c1 = conv(x, w1) + b1
    o1 = jnp.maximum(_batchnorm_train(c1, g1, be1), 0.0)
    c2 = conv(o1, w2) + b2
    o2 = _batchnorm_train(c2, g2, be2)
    if in_ch != out_ch:
        sc = conv(x, ws.reshape(1, 1, *ws.shape)) + bs
    else:
        sc = x
    out = jnp.maximum(o2 + sc, 0.0)
    return jnp.transpose(out, (0, 3, 1, 2))


def make_params(key, in_channels, out_channels):
    """Deterministic parameter init (shapes follow ResidualBlock.__init__)."""
    ks = jax.random.split(key, 8)
    w1 = 0.1 * jax.random.normal(ks[0], (3, 3, in_channels, out_channels),
                                 jnp.float32)
    b1 = 0.1 * jax.random.normal(ks[1], (out_channels,), jnp.float32)
    g1 = 1.0 + 0.1 * jax.random.normal(ks[2], (out_channels,), jnp.float32)
    be1 = 0.1 * jax.random.normal(ks[3], (out_channels,), jnp.float32)
    w2 = 0.1 * jax.random.normal(ks[4], (3, 3, out_channels, out_channels),
                                 jnp.float32)
    b2 = 0.1 * jax.random.normal(ks[5], (out_channels,), jnp.float32)
    g2 = 1.0 + 0.1 * jax.random.normal(ks[6], (out_channels,), jnp.float32)
    be2 = 0.1 * jax.random.normal(ks[7], (out_channels,), jnp.float32)
    ks2 = jax.random.split(ks[0], 2)
    ws = 0.1 * jax.random.normal(ks2[0], (in_channels, out_channels),
                                 jnp.float32)
    bs = 0.1 * jax.random.normal(ks2[1], (out_channels,), jnp.float32)
    return (w1, b1, g1, be1, w2, b2, g2, be2, ws, bs)


if __name__ == "__main__":
    B, Cin, Cout, H, W = 2, 4, 8, 16, 16
    key = jax.random.PRNGKey(0)
    kx, kp = jax.random.split(key)
    x = jax.random.normal(kx, (B, Cin, H, W), jnp.float32)
    params = make_params(kp, Cin, Cout)

    out = jax.block_until_ready(residual_block(x, params))
    assert out.shape == (B, Cout, H, W)

    # Precision-matched reference (bf16 conv operands, f32 accumulation).
    ref_bf16 = residual_block_reference(x, params, conv_dtype=jnp.bfloat16)
    err_bf16 = float(jnp.max(jnp.abs(out - ref_bf16)))
    assert jnp.allclose(out, ref_bf16, atol=5e-3, rtol=5e-3), err_bf16

    # Full-f32 reference (looser tolerance: kernel uses bf16 MXU operands).
    ref_f32 = residual_block_reference(x, params, conv_dtype=jnp.float32)
    err_f32 = float(jnp.max(jnp.abs(out - ref_f32)))
    assert jnp.allclose(out, ref_f32, atol=5e-2, rtol=5e-2), err_f32

    print("KERNEL_OK")
</pallas_src>

<mosaic_0001>
module attributes {stable_mosaic.version = 11 : i64} {
  func.func @_fused_kernel(%arg0: memref<2x16x64xf32, #tpu.memory_space<vmem>>, %arg1: memref<3x72x272xbf16, #tpu.memory_space<vmem>>, %arg2: memref<3x144x128xbf16, #tpu.memory_space<vmem>>, %arg3: memref<144x144xf32, #tpu.memory_space<vmem>>, %arg4: memref<1x144xf32, #tpu.memory_space<vmem>>, %arg5: memref<1x144xf32, #tpu.memory_space<vmem>>, %arg6: memref<1x128xf32, #tpu.memory_space<vmem>>, %arg7: memref<1x128xf32, #tpu.memory_space<vmem>>, %arg8: memref<36x1xf32, #tpu.memory_space<vmem>>, %arg9: memref<1x144xf32, #tpu.memory_space<vmem>>, %arg10: memref<2x16x128xf32, #tpu.memory_space<vmem>>, %arg11: memref<38x72xf32, #tpu.memory_space<vmem>>, %arg12: memref<38x144xf32, #tpu.memory_space<vmem>>) attributes {dimension_semantics = [], scalar_prefetch = 0 : i64, scratch_operands = 2 : i64, tpu.core_type = #tpu.core_type<tc>} {
    %cst = arith.constant 0.000000e+00 : f32
    %0 = vector.broadcast %cst : f32 to vector<38x72xf32>
    %c0 = arith.constant 0 : index
    %c0_0 = arith.constant 0 : index
    %1 = vector.load %arg11[%c0, %c0_0] : memref<38x72xf32, #tpu.memory_space<vmem>>, vector<38x72xf32>
    tpu.vector_store %arg11[%c0, %c0_0], %0 {strides = array<i32>} : memref<38x72xf32, #tpu.memory_space<vmem>>, vector<38x72xf32>,
    %cst_1 = arith.constant 0.000000e+00 : f32
    %2 = vector.broadcast %cst_1 : f32 to vector<38x144xf32>
    %c0_2 = arith.constant 0 : index
    %c0_3 = arith.constant 0 : index
    %3 = vector.load %arg12[%c0_2, %c0_3] : memref<38x144xf32, #tpu.memory_space<vmem>>, vector<38x144xf32>
    tpu.vector_store %arg12[%c0_2, %c0_3], %2 {strides = array<i32>} : memref<38x144xf32, #tpu.memory_space<vmem>>, vector<38x144xf32>,
    %c0_4 = arith.constant 0 : index
    %c0_5 = arith.constant 0 : index
    %c0_6 = arith.constant 0 : index
    %4 = vector.load %arg0[%c0_4, %c0_5, %c0_6] : memref<2x16x64xf32, #tpu.memory_space<vmem>>, vector<1x16x64xf32>
    %5 = vector.shape_cast %4 : vector<1x16x64xf32> to vector<16x64xf32>
    %c1 = arith.constant 1 : index
    %c4 = arith.constant 4 : index
    %6 = vector.load %arg11[%c1, %c4] : memref<38x72xf32, #tpu.memory_space<vmem>>, vector<16x64xf32>
    tpu.vector_store %arg11[%c1, %c4], %5 {strides = array<i32>} : memref<38x72xf32, #tpu.memory_space<vmem>>, vector<16x64xf32>,
    %c1_7 = arith.constant 1 : index
    %c0_8 = arith.constant 0 : index
    %c0_9 = arith.constant 0 : index
    %7 = vector.load %arg0[%c1_7, %c0_8, %c0_9] : memref<2x16x64xf32, #tpu.memory_space<vmem>>, vector<1x16x64xf32>
    %8 = vector.shape_cast %7 : vector<1x16x64xf32> to vector<16x64xf32>
    %c19 = arith.constant 19 : index
    %c4_10 = arith.constant 4 : index
    %9 = vector.load %arg11[%c19, %c4_10] : memref<38x72xf32, #tpu.memory_space<vmem>>, vector<16x64xf32>
    tpu.vector_store %arg11[%c19, %c4_10], %8 {strides = array<i32>} : memref<38x72xf32, #tpu.memory_space<vmem>>, vector<16x64xf32>,
    %cst_11 = arith.constant 0.000000e+00 : f32
    %10 = vector.broadcast %cst_11 : f32 to vector<36x272xf32>
    %c0_12 = arith.constant 0 : index
    %c0_13 = arith.constant 0 : index
    %11 = vector.load %arg11[%c0_12, %c0_13] : memref<38x72xf32, #tpu.memory_space<vmem>>, vector<36x72xf32>
    %12 = arith.truncf %11 : vector<36x72xf32> to vector<36x72xbf16>
    %c0_14 = arith.constant 0 : index
    %c0_15 = arith.constant 0 : index
    %c0_16 = arith.constant 0 : index
    %13 = vector.load %arg1[%c0_14, %c0_15, %c0_16] : memref<3x72x272xbf16, #tpu.memory_space<vmem>>, vector<1x72x272xbf16>
    %14 = vector.shape_cast %13 : vector<1x72x272xbf16> to vector<72x272xbf16>
    %cst_17 = arith.constant dense<0.000000e+00> : vector<36x272xf32>
    %15 = tpu.matmul %12, %14, %cst_17 {dimension_numbers = #tpu.dot_dimension_numbers<[1], [0], [0], [1], [0, 0, 1, 1], [], []>} : vector<36x72xbf16>, vector<72x272xbf16>, vector<36x272xf32> -> vector<36x272xf32>
    %16 = arith.addf %10, %15 : vector<36x272xf32>
    %c1_18 = arith.constant 1 : index
    %c0_19 = arith.constant 0 : index
    %17 = vector.load %arg11[%c1_18, %c0_19] : memref<38x72xf32, #tpu.memory_space<vmem>>, vector<36x72xf32>
    %18 = arith.truncf %17 : vector<36x72xf32> to vector<36x72xbf16>
    %c1_20 = arith.constant 1 : index
    %c0_21 = arith.constant 0 : index
    %c0_22 = arith.constant 0 : index
    %19 = vector.load %arg1[%c1_20, %c0_21, %c0_22] : memref<3x72x272xbf16, #tpu.memory_space<vmem>>, vector<1x72x272xbf16>
    %20 = vector.shape_cast %19 : vector<1x72x272xbf16> to vector<72x272xbf16>
    %cst_23 = arith.constant dense<0.000000e+00> : vector<36x272xf32>
    %21 = tpu.matmul %18, %20, %cst_23 {dimension_numbers = #tpu.dot_dimension_numbers<[1], [0], [0], [1], [0, 0, 1, 1], [], []>} : vector<36x72xbf16>, vector<72x272xbf16>, vector<36x272xf32> -> vector<36x272xf32>
    %22 = arith.addf %16, %21 : vector<36x272xf32>
    %c2 = arith.constant 2 : index
    %c0_24 = arith.constant 0 : index
    %23 = vector.load %arg11[%c2, %c0_24] : memref<38x72xf32, #tpu.memory_space<vmem>>, vector<36x72xf32>
    %24 = arith.truncf %23 : vector<36x72xf32> to vector<36x72xbf16>
    %c2_25 = arith.constant 2 : index
    %c0_26 = arith.constant 0 : index
    %c0_27 = arith.constant 0 : index
    %25 = vector.load %arg1[%c2_25, %c0_26, %c0_27] : memref<3x72x272xbf16, #tpu.memory_space<vmem>>, vector<1x72x272xbf16>
    %26 = vector.shape_cast %25 : vector<1x72x272xbf16> to vector<72x272xbf16>
    %cst_28 = arith.constant dense<0.000000e+00> : vector<36x272xf32>
    %27 = tpu.matmul %24, %26, %cst_28 {dimension_numbers = #tpu.dot_dimension_numbers<[1], [0], [0], [1], [0, 0, 1, 1], [], []>} : vector<36x72xbf16>, vector<72x272xbf16>, vector<36x272xf32> -> vector<36x272xf32>
    %28 = arith.addf %22, %27 : vector<36x272xf32>
    %29 = vector.extract_strided_slice %28 {offsets = [0, 0], sizes = [36, 128], strides = [1, 1]} : vector<36x272xf32> to vector<36x128xf32>
    %30 = vector.extract_strided_slice %28 {offsets = [0, 128], sizes = [36, 144], strides = [1, 1]} : vector<36x272xf32> to vector<36x144xf32>
    %c0_29 = arith.constant 0 : index
    %c0_30 = arith.constant 0 : index
    %31 = vector.load %arg8[%c0_29, %c0_30] : memref<36x1xf32, #tpu.memory_space<vmem>>, vector<36x1xf32>
    %c0_31 = arith.constant 0 : index
    %c0_32 = arith.constant 0 : index
    %32 = vector.load %arg9[%c0_31, %c0_32] : memref<1x144xf32, #tpu.memory_space<vmem>>, vector<1x144xf32>
    %33 = vector.broadcast %31 : vector<36x1xf32> to vector<36x144xf32>
    %34 = vector.broadcast %32 : vector<1x144xf32> to vector<36x144xf32>
    %35 = arith.mulf %33, %34 : vector<36x144xf32>
    %c0_33 = arith.constant 0 : index
    %c0_34 = arith.constant 0 : index
    %36 = vector.load %arg3[%c0_33, %c0_34] : memref<144x144xf32, #tpu.memory_space<vmem>>, vector<144x144xf32>
    %37 = vector.broadcast %31 : vector<36x1xf32> to vector<36x144xf32>
    %38 = arith.mulf %30, %37 : vector<36x144xf32>
    %cst_35 = arith.constant dense<0.000000e+00> : vector<144xf32>
    %39 = vector.multi_reduction <add>, %38, %cst_35 [0] : vector<36x144xf32> to vector<144xf32>
    %40 = vector.shape_cast %39 : vector<144xf32> to vector<1x144xf32>
    %cst_36 = arith.constant dense<0.000000e+00> : vector<1x144xf32>
    %41 = tpu.matmul %40, %36, %cst_36 {dimension_numbers = #tpu.dot_dimension_numbers<[1], [0], [0], [1], [0, 0, 1, 1], [], []>} : vector<1x144xf32>, vector<144x144xf32>, vector<1x144xf32> -> vector<1x144xf32>
    %cst_37 = arith.constant 0.001953125 : f32
    %42 = vector.broadcast %cst_37 : f32 to vector<1x144xf32>
    %43 = arith.mulf %41, %42 : vector<1x144xf32>
    %44 = vector.broadcast %43 : vector<1x144xf32> to vector<36x144xf32>
    %45 = arith.subf %30, %44 : vector<36x144xf32>
    %46 = arith.mulf %45, %35 : vector<36x144xf32>
    %47 = arith.mulf %46, %46 : vector<36x144xf32>
    %cst_38 = arith.constant dense<0.000000e+00> : vector<144xf32>
    %48 = vector.multi_reduction <add>, %47, %cst_38 [0] : vector<36x144xf32> to vector<144xf32>
    %49 = vector.shape_cast %48 : vector<144xf32> to vector<1x144xf32>
    %cst_39 = arith.constant dense<0.000000e+00> : vector<1x144xf32>
    %50 = tpu.matmul %49, %36, %cst_39 {dimension_numbers = #tpu.dot_dimension_numbers<[1], [0], [0], [1], [0, 0, 1, 1], [], []>} : vector<1x144xf32>, vector<144x144xf32>, vector<1x144xf32> -> vector<1x144xf32>
    %cst_40 = arith.constant 0.001953125 : f32
    %51 = vector.broadcast %cst_40 : f32 to vector<1x144xf32>
    %52 = arith.mulf %50, %51 : vector<1x144xf32>
    %c0_41 = arith.constant 0 : index
    %c0_42 = arith.constant 0 : index
    %53 = vector.load %arg4[%c0_41, %c0_42] : memref<1x144xf32, #tpu.memory_space<vmem>>, vector<1x144xf32>
    %cst_43 = arith.constant 9.99999974E-6 : f32
    %54 = vector.broadcast %cst_43 : f32 to vector<1x144xf32>
    %55 = arith.addf %52, %54 : vector<1x144xf32>
    %56 = math.rsqrt %55 : vector<1x144xf32>
    %57 = arith.mulf %53, %56 : vector<1x144xf32>
    %58 = vector.broadcast %57 : vector<1x144xf32> to vector<36x144xf32>
    %59 = arith.mulf %46, %58 : vector<36x144xf32>
    %c0_44 = arith.constant 0 : index
    %c0_45 = arith.constant 0 : index
    %60 = vector.load %arg5[%c0_44, %c0_45] : memref<1x144xf32, #tpu.memory_space<vmem>>, vector<1x144xf32>
    %61 = vector.broadcast %60 : vector<1x144xf32> to vector<36x144xf32>
    %62 = arith.addf %59, %61 : vector<36x144xf32>
    %cst_46 = arith.constant 0.000000e+00 : f32
    %63 = vector.broadcast %cst_46 : f32 to vector<36x144xf32>
    %64 = arith.maximumf %62, %63 : vector<36x144xf32>
    %65 = arith.mulf %64, %35 : vector<36x144xf32>
    %c1_47 = arith.constant 1 : index
    %c0_48 = arith.constant 0 : index
    %66 = vector.load %arg12[%c1_47, %c0_48] : memref<38x144xf32, #tpu.memory_space<vmem>>, vector<36x144xf32>
    tpu.vector_store %arg12[%c1_47, %c0_48], %65 {strides = array<i32>} : memref<38x144xf32, #tpu.memory_space<vmem>>, vector<36x144xf32>,
    %cst_49 = arith.constant 0.000000e+00 : f32
    %67 = vector.broadcast %cst_49 : f32 to vector<36x128xf32>
    %c0_50 = arith.constant 0 : index
    %c0_51 = arith.constant 0 : index
    %68 = vector.load %arg12[%c0_50, %c0_51] : memref<38x144xf32, #tpu.memory_space<vmem>>, vector<36x144xf32>
    %69 = arith.truncf %68 : vector<36x144xf32> to vector<36x144xbf16>
    %c0_52 = arith.constant 0 : index
    %c0_53 = arith.constant 0 : index
    %c0_54 = arith.constant 0 : index
    %70 = vector.load %arg2[%c0_52, %c0_53, %c0_54] : memref<3x144x128xbf16, #tpu.memory_space<vmem>>, vector<1x144x128xbf16>
    %71 = vector.shape_cast %70 : vector<1x144x128xbf16> to vector<144x128xbf16>
    %cst_55 = arith.constant dense<0.000000e+00> : vector<36x128xf32>
    %72 = tpu.matmul %69, %71, %cst_55 {dimension_numbers = #tpu.dot_dimension_numbers<[1], [0], [0], [1], [0, 0, 1, 1], [], []>} : vector<36x144xbf16>, vector<144x128xbf16>, vector<36x128xf32> -> vector<36x128xf32>
    %73 = arith.addf %67, %72 : vector<36x128xf32>
    %c1_56 = arith.constant 1 : index
    %c0_57 = arith.constant 0 : index
    %74 = vector.load %arg12[%c1_56, %c0_57] : memref<38x144xf32, #tpu.memory_space<vmem>>, vector<36x144xf32>
    %75 = arith.truncf %74 : vector<36x144xf32> to vector<36x144xbf16>
    %c1_58 = arith.constant 1 : index
    %c0_59 = arith.constant 0 : index
    %c0_60 = arith.constant 0 : index
    %76 = vector.load %arg2[%c1_58, %c0_59, %c0_60] : memref<3x144x128xbf16, #tpu.memory_space<vmem>>, vector<1x144x128xbf16>
    %77 = vector.shape_cast %76 : vector<1x144x128xbf16> to vector<144x128xbf16>
    %cst_61 = arith.constant dense<0.000000e+00> : vector<36x128xf32>
    %78 = tpu.matmul %75, %77, %cst_61 {dimension_numbers = #tpu.dot_dimension_numbers<[1], [0], [0], [1], [0, 0, 1, 1], [], []>} : vector<36x144xbf16>, vector<144x128xbf16>, vector<36x128xf32> -> vector<36x128xf32>
    %79 = arith.addf %73, %78 : vector<36x128xf32>
    %c2_62 = arith.constant 2 : index
    %c0_63 = arith.constant 0 : index
    %80 = vector.load %arg12[%c2_62, %c0_63] : memref<38x144xf32, #tpu.memory_space<vmem>>, vector<36x144xf32>
    %81 = arith.truncf %80 : vector<36x144xf32> to vector<36x144xbf16>
    %c2_64 = arith.constant 2 : index
    %c0_65 = arith.constant 0 : index
    %c0_66 = arith.constant 0 : index
    %82 = vector.load %arg2[%c2_64, %c0_65, %c0_66] : memref<3x144x128xbf16, #tpu.memory_space<vmem>>, vector<1x144x128xbf16>
    %83 = vector.shape_cast %82 : vector<1x144x128xbf16> to vector<144x128xbf16>
    %cst_67 = arith.constant dense<0.000000e+00> : vector<36x128xf32>
    %84 = tpu.matmul %81, %83, %cst_67 {dimension_numbers = #tpu.dot_dimension_numbers<[1], [0], [0], [1], [0, 0, 1, 1], [], []>} : vector<36x144xbf16>, vector<144x128xbf16>, vector<36x128xf32> -> vector<36x128xf32>
    %85 = arith.addf %79, %84 : vector<36x128xf32>
    %c0_68 = arith.constant 0 : index
    %c0_69 = arith.constant 0 : index
    %86 = vector.load %arg3[%c0_68, %c0_69] : memref<144x144xf32, #tpu.memory_space<vmem>>, vector<128x128xf32>
    %87 = vector.broadcast %31 : vector<36x1xf32> to vector<36x128xf32>
    %88 = arith.mulf %85, %87 : vector<36x128xf32>
    %cst_70 = arith.constant dense<0.000000e+00> : vector<128xf32>
    %89 = vector.multi_reduction <add>, %88, %cst_70 [0] : vector<36x128xf32> to vector<128xf32>
    %90 = vector.shape_cast %89 : vector<128xf32> to vector<1x128xf32>
    %cst_71 = arith.constant dense<0.000000e+00> : vector<1x128xf32>
    %91 = tpu.matmul %90, %86, %cst_71 {dimension_numbers = #tpu.dot_dimension_numbers<[1], [0], [0], [1], [0, 0, 1, 1], [], []>} : vector<1x128xf32>, vector<128x128xf32>, vector<1x128xf32> -> vector<1x128xf32>
    %cst_72 = arith.constant 0.001953125 : f32
    %92 = vector.broadcast %cst_72 : f32 to vector<1x128xf32>
    %93 = arith.mulf %91, %92 : vector<1x128xf32>
    %94 = vector.broadcast %93 : vector<1x128xf32> to vector<36x128xf32>
    %95 = arith.subf %85, %94 : vector<36x128xf32>
    %96 = vector.broadcast %31 : vector<36x1xf32> to vector<36x128xf32>
    %97 = arith.mulf %95, %96 : vector<36x128xf32>
    %98 = arith.mulf %97, %97 : vector<36x128xf32>
    %cst_73 = arith.constant dense<0.000000e+00> : vector<128xf32>
    %99 = vector.multi_reduction <add>, %98, %cst_73 [0] : vector<36x128xf32> to vector<128xf32>
    %100 = vector.shape_cast %99 : vector<128xf32> to vector<1x128xf32>
    %cst_74 = arith.constant dense<0.000000e+00> : vector<1x128xf32>
    %101 = tpu.matmul %100, %86, %cst_74 {dimension_numbers = #tpu.dot_dimension_numbers<[1], [0], [0], [1], [0, 0, 1, 1], [], []>} : vector<1x128xf32>, vector<128x128xf32>, vector<1x128xf32> -> vector<1x128xf32>
    %cst_75 = arith.constant 0.001953125 : f32
    %102 = vector.broadcast %cst_75 : f32 to vector<1x128xf32>
    %103 = arith.mulf %101, %102 : vector<1x128xf32>
    %c0_76 = arith.constant 0 : index
    %c0_77 = arith.constant 0 : index
    %104 = vector.load %arg6[%c0_76, %c0_77] : memref<1x128xf32, #tpu.memory_space<vmem>>, vector<1x128xf32>
    %cst_78 = arith.constant 9.99999974E-6 : f32
    %105 = vector.broadcast %cst_78 : f32 to vector<1x128xf32>
    %106 = arith.addf %103, %105 : vector<1x128xf32>
    %107 = math.rsqrt %106 : vector<1x128xf32>
    %108 = arith.mulf %104, %107 : vector<1x128xf32>
    %109 = vector.broadcast %108 : vector<1x128xf32> to vector<36x128xf32>
    %110 = arith.mulf %97, %109 : vector<36x128xf32>
    %c0_79 = arith.constant 0 : index
    %c0_80 = arith.constant 0 : index
    %111 = vector.load %arg7[%c0_79, %c0_80] : memref<1x128xf32, #tpu.memory_space<vmem>>, vector<1x128xf32>
    %112 = vector.broadcast %111 : vector<1x128xf32> to vector<36x128xf32>
    %113 = arith.addf %110, %112 : vector<36x128xf32>
    %114 = vector.extract_strided_slice %113 {offsets = [0, 0], sizes = [16, 128], strides = [1, 1]} : vector<36x128xf32> to vector<16x128xf32>
    %115 = vector.extract_strided_slice %29 {offsets = [0, 0], sizes = [16, 128], strides = [1, 1]} : vector<36x128xf32> to vector<16x128xf32>
    %116 = arith.addf %114, %115 : vector<16x128xf32>
    %cst_81 = arith.constant 0.000000e+00 : f32
    %117 = vector.broadcast %cst_81 : f32 to vector<16x128xf32>
    %118 = arith.maximumf %116, %117 : vector<16x128xf32>
    %c0_82 = arith.constant 0 : index
    %c0_83 = arith.constant 0 : index
    %c0_84 = arith.constant 0 : index
    %119 = vector.load %arg10[%c0_82, %c0_83, %c0_84] : memref<2x16x128xf32, #tpu.memory_space<vmem>>, vector<1x16x128xf32>
    %120 = vector.shape_cast %119 : vector<1x16x128xf32> to vector<16x128xf32>
    %121 = vector.shape_cast %118 : vector<16x128xf32> to vector<1x16x128xf32>
    tpu.vector_store %arg10[%c0_82, %c0_83, %c0_84], %121 {strides = array<i32>} : memref<2x16x128xf32, #tpu.memory_space<vmem>>, vector<1x16x128xf32>,
    %122 = vector.extract_strided_slice %113 {offsets = [18, 0], sizes = [16, 128], strides = [1, 1]} : vector<36x128xf32> to vector<16x128xf32>
    %123 = vector.extract_strided_slice %29 {offsets = [18, 0], sizes = [16, 128], strides = [1, 1]} : vector<36x128xf32> to vector<16x128xf32>
    %124 = arith.addf %122, %123 : vector<16x128xf32>
    %cst_85 = arith.constant 0.000000e+00 : f32
    %125 = vector.broadcast %cst_85 : f32 to vector<16x128xf32>
    %126 = arith.maximumf %124, %125 : vector<16x128xf32>
    %c1_86 = arith.constant 1 : index
    %c0_87 = arith.constant 0 : index
    %c0_88 = arith.constant 0 : index
    %127 = vector.load %arg10[%c1_86, %c0_87, %c0_88] : memref<2x16x128xf32, #tpu.memory_space<vmem>>, vector<1x16x128xf32>
    %128 = vector.shape_cast %127 : vector<1x16x128xf32> to vector<16x128xf32>
    %129 = vector.shape_cast %126 : vector<16x128xf32> to vector<1x16x128xf32>
    tpu.vector_store %arg10[%c1_86, %c0_87, %c0_88], %129 {strides = array<i32>} : memref<2x16x128xf32, #tpu.memory_space<vmem>>, vector<1x16x128xf32>,
    return
  }
}

</mosaic_0001>

<llo_original>
// kernel: tile.23
$region0: #{tile.23}
  #allocation0 [shape = 's32[1]{0}', space=sflag, size = 0x4, scoped, tag = 'scoped memory for tile.23']
  %s0 = inlined_call_operand.vmem [shape: f32[8], index: 0, kind: input, shape index: {}]
  %s1 = inlined_call_operand.vmem [shape: f32[18,8], index: 1, kind: output, shape index: {}]
  // Predicated region
  $region2: #{tile.23} parent=0 // pred_check
    _
  $region3: #{tile.23} parent=0 // pred_check_branch
    %3 = sbr.rel (0) target = $region5
  $region4: #{tile.23} parent=0 // pred_region
    _
  $region5: #{tile.23} parent=0 // pred_fallthru
    _
  %v4 = vld [vmem:[%s0] ss:$0 sm:$0xff]
  %5 = vst [vmem:[%s1] sm:$0xff] %v4
  %s6 = scalar_lea.vmem %s1, 8
  %7 = vst [vmem:[%s6] sm:$0xff] %v4
  %s8 = scalar_lea.vmem %s1, 16
  %9 = vst [vmem:[%s8] sm:$0xff] %v4

// kernel: tile.24
$region0: #{tile.24}
  %s0 = inlined_call_operand.vmem [shape: f32[18,8], index: 0, kind: input, shape index: {}]
  %s1 = inlined_call_operand.vmem [shape: f32[1,144], index: 1, kind: output, shape index: {}]
  $region1: #{tile.24} parent=0
    #allocation0 [shape = 'u8[8192]{0}', space=vmem, size = 0x2000, scoped, tag = 'scoped mem for output reshape']
    %s2 = smov 3
    %v3 = vld [vmem:[%s0] ss:$16 sm:%s2]
    %vm4 = vcmask 64512
    %5 = vst.msk [vmem:[#allocation0] ss:$8 sm:$0x3] %vm4, %v3
    %s6 = scalar_lea.vmem %s0, 15
    %v7 = vld [vmem:[%s6] sm:$0x1]
    %8 = vrot.lane.b32.xlu0 %v7, 120
    %v9 = vpop.permute.xlu0 %8
    %vm10 = vcmask 1048512
    %11 = vst.msk [vmem:[#allocation0] sm:$0x1] %vm10, %v9
    %s12 = scalar_lea.vmem %s0, 14
    %v13 = vld [vmem:[%s12] sm:$0x1]
    %14 = vrot.lane.b32.xlu0 %v13, 112
    %v15 = vpop.permute.xlu0 %14
    %vm16 = vcmask 982912
    %17 = vst.msk [vmem:[#allocation0] sm:$0x1] %vm16, %v15
    %s18 = scalar_lea.vmem %s0, 13
    %v19 = vld [vmem:[%s18] sm:$0x1]
    %20 = vrot.lane.b32.xlu0 %v19, 104
    %v21 = vpop.permute.xlu0 %20
    %vm22 = vcmask 917312
    %23 = vst.msk [vmem:[#allocation0] sm:$0x1] %vm22, %v21
    %s24 = scalar_lea.vmem %s0, 12
    %v25 = vld [vmem:[%s24] sm:$0x1]
    %26 = vrot.lane.b32.xlu0 %v25, 96
    %v27 = vpop.permute.xlu0 %26
    %vm28 = vcmask 851712
    %29 = vst.msk [vmem:[#allocation0] sm:$0x1] %vm28, %v27
    %s30 = scalar_lea.vmem %s0, 11
    %v31 = vld [vmem:[%s30] sm:$0x1]
    %32 = vrot.lane.b32.xlu0 %v31, 88
    %v33 = vpop.permute.xlu0 %32
    %vm34 = vcmask 786112
    %35 = vst.msk [vmem:[#allocation0] sm:$0x1] %vm34, %v33
    %s36 = scalar_lea.vmem %s0, 10
    %v37 = vld [vmem:[%s36] sm:$0x1]
    %38 = vrot.lane.b32.xlu0 %v37, 80
    %v39 = vpop.permute.xlu0 %38
    %vm40 = vcmask 720512
    %41 = vst.msk [vmem:[#allocation0] sm:$0x1] %vm40, %v39
    %s42 = scalar_lea.vmem %s0, 9
    %v43 = vld [vmem:[%s42] sm:$0x1]
    %44 = vrot.lane.b32.xlu0 %v43, 72
    %v45 = vpop.permute.xlu0 %44
    %vm46 = vcmask 654912
    %47 = vst.msk [vmem:[#allocation0] sm:$0x1] %vm46, %v45
    %s48 = scalar_lea.vmem %s0, 8
    %v49 = vld [vmem:[%s48] sm:$0x1]
    %50 = vrot.lane.b32.xlu0 %v49, 64
    %v51 = vpop.permute.xlu0 %50
    %vm52 = vcmask 589312
    %53 = vst.msk [vmem:[#allocation0] sm:$0x1] %vm52, %v51
    %s54 = scalar_lea.vmem %s0, 7
    %v55 = vld [vmem:[%s54] sm:$0x1]
    %56 = vrot.lane.b32.xlu0 %v55, 56
    %v57 = vpop.permute.xlu0 %56
    %vm58 = vcmask 523712
    %59 = vst.msk [vmem:[#allocation0] sm:$0x1] %vm58, %v57
    %s60 = scalar_lea.vmem %s0, 6
    %v61 = vld [vmem:[%s60] sm:$0x1]
    %62 = vrot.lane.b32.xlu0 %v61, 48
    %v63 = vpop.permute.xlu0 %62
    %vm64 = vcmask 458112
    %65 = vst.msk [vmem:[#allocation0] sm:$0x1] %vm64, %v63
    %s66 = scalar_lea.vmem %s0, 5
    %v67 = vld [vmem:[%s66] sm:$0x1]
    %68 = vrot.lane.b32.xlu0 %v67, 40
    %v69 = vpop.permute.xlu0 %68
    %vm70 = vcmask 392512
    %71 = vst.msk [vmem:[#allocation0] sm:$0x1] %vm70, %v69
    %s72 = scalar_lea.vmem %s0, 4
    %v73 = vld [vmem:[%s72] sm:$0x1]
    %74 = vrot.lane.b32.xlu0 %v73, 32
    %v75 = vpop.permute.xlu0 %74
    %vm76 = vcmask 326912
    %77 = vst.msk [vmem:[#allocation0] sm:$0x1] %vm76, %v75
    %s78 = scalar_lea.vmem %s0, 3
    %v79 = vld [vmem:[%s78] sm:$0x1]
    %80 = vrot.lane.b32.xlu0 %v79, 24
    %v81 = vpop.permute.xlu0 %80
    %vm82 = vcmask 261312
    %83 = vst.msk [vmem:[#allocation0] sm:$0x1] %vm82, %v81
    %s84 = scalar_lea.vmem %s0, 2
    %v85 = vld [vmem:[%s84] sm:$0x1]
    %86 = vrot.lane.b32.xlu0 %v85, 16
    %v87 = vpop.permute.xlu0 %86
    %vm88 = vcmask 195712
    %89 = vst.msk [vmem:[#allocation0] sm:$0x1] %vm88, %v87
    %s90 = scalar_lea.vmem %s0, 1
    %s91 = smov 3
    %v92 = vld [vmem:[%s90] ss:$16 sm:%s91]
    %93 = vrot.lane.b32.xlu0 %v92, 8
    %v94 = vpop.permute.xlu0 %93
    %vm95 = vcmask 130112
    %96 = vst.msk [vmem:[#allocation0] ss:$8 sm:$0x3] %vm95, %v94
    %s98 = ssub.s32 2, 1
    %v99 = vld [vmem:[#allocation0] sm:%s98]
    %s101 = ssub.s32 2, 1
    %102 = vst [vmem:[%s1] sm:%s101] %v99
    %s103 = scalar_lea.vmem [#allocation0], 8
    %v104 = vld [vmem:[%s103] sm:%s98]
    %s106 = ssub.s32 2, 1
    %s107 = scalar_lea.vmem %s1, 1
    %108 = vst [vmem:[%s107] sm:%s106] %v104

// kernel: tile.38
$region0: #{tile.38}
  #allocation0 [shape = 's32[1]{0}', space=sflag, size = 0x4, scoped, tag = 'scoped memory for tile.38']
  %s0 = inlined_call_operand.vmem [shape: f32[8], index: 0, kind: input, shape index: {}]
  %s1 = inlined_call_operand.vmem [shape: f32[16,8], index: 1, kind: output, shape index: {}]
  // Predicated region
  $region2: #{tile.38} parent=0 // pred_check
    _
  $region3: #{tile.38} parent=0 // pred_check_branch
    %3 = sbr.rel (0) target = $region5
  $region4: #{tile.38} parent=0 // pred_region
    _
  $region5: #{tile.38} parent=0 // pred_fallthru
    _
  %v4 = vld [vmem:[%s0] ss:$0 sm:$0xff]
  %5 = vst [vmem:[%s1] sm:$0xff] %v4
  %s6 = scalar_lea.vmem %s1, 8
  %7 = vst [vmem:[%s6] sm:$0xff] %v4

// kernel: tile.39
$region0: #{tile.39}
  %s0 = inlined_call_operand.vmem [shape: f32[16,8], index: 0, kind: input, shape index: {}]
  %s1 = inlined_call_operand.vmem [shape: f32[1,128], index: 1, kind: output, shape index: {}]
  $region1: #{tile.39} parent=0
    #allocation0 [shape = 'u8[4096]{0}', space=vmem, size = 0x1000, scoped, tag = 'scoped mem for output reshape']
    %v2 = vld [vmem:[%s0] sm:$0x1]
    %vm3 = vcmask 64512
    %4 = vst.msk [vmem:[#allocation0] sm:$0x1] %vm3, %v2
    %s5 = scalar_lea.vmem %s0, 15
    %v6 = vld [vmem:[%s5] sm:$0x1]
    %7 = vrot.lane.b32.xlu0 %v6, 120
    %v8 = vpop.permute.xlu0 %7
    %vm9 = vcmask 1048512
    %10 = vst.msk [vmem:[#allocation0] sm:$0x1] %vm9, %v8
    %s11 = scalar_lea.vmem %s0, 14
    %v12 = vld [vmem:[%s11] sm:$0x1]
    %13 = vrot.lane.b32.xlu0 %v12, 112
    %v14 = vpop.permute.xlu0 %13
    %vm15 = vcmask 982912
    %16 = vst.msk [vmem:[#allocation0] sm:$0x1] %vm15, %v14
    %s17 = scalar_lea.vmem %s0, 13
    %v18 = vld [vmem:[%s17] sm:$0x1]
    %19 = vrot.lane.b32.xlu0 %v18, 104
    %v20 = vpop.permute.xlu0 %19
    %vm21 = vcmask 917312
    %22 = vst.msk [vmem:[#allocation0] sm:$0x1] %vm21, %v20
    %s23 = scalar_lea.vmem %s0, 12
    %v24 = vld [vmem:[%s23] sm:$0x1]
    %25 = vrot.lane.b32.xlu0 %v24, 96
    %v26 = vpop.permute.xlu0 %25
    %vm27 = vcmask 851712
    %28 = vst.msk [vmem:[#allocation0] sm:$0x1] %vm27, %v26
    %s29 = scalar_lea.vmem %s0, 11
    %v30 = vld [vmem:[%s29] sm:$0x1]
    %31 = vrot.lane.b32.xlu0 %v30, 88
    %v32 = vpop.permute.xlu0 %31
    %vm33 = vcmask 786112
    %34 = vst.msk [vmem:[#allocation0] sm:$0x1] %vm33, %v32
    %s35 = scalar_lea.vmem %s0, 10
    %v36 = vld [vmem:[%s35] sm:$0x1]
    %37 = vrot.lane.b32.xlu0 %v36, 80
    %v38 = vpop.permute.xlu0 %37
    %vm39 = vcmask 720512
    %40 = vst.msk [vmem:[#allocation0] sm:$0x1] %vm39, %v38
    %s41 = scalar_lea.vmem %s0, 9
    %v42 = vld [vmem:[%s41] sm:$0x1]
    %43 = vrot.lane.b32.xlu0 %v42, 72
    %v44 = vpop.permute.xlu0 %43
    %vm45 = vcmask 654912
    %46 = vst.msk [vmem:[#allocation0] sm:$0x1] %vm45, %v44
    %s47 = scalar_lea.vmem %s0, 8
    %v48 = vld [vmem:[%s47] sm:$0x1]
    %49 = vrot.lane.b32.xlu0 %v48, 64
    %v50 = vpop.permute.xlu0 %49
    %vm51 = vcmask 589312
    %52 = vst.msk [vmem:[#allocation0] sm:$0x1] %vm51, %v50
    %s53 = scalar_lea.vmem %s0, 7
    %v54 = vld [vmem:[%s53] sm:$0x1]
    %55 = vrot.lane.b32.xlu0 %v54, 56
    %v56 = vpop.permute.xlu0 %55
    %vm57 = vcmask 523712
    %58 = vst.msk [vmem:[#allocation0] sm:$0x1] %vm57, %v56
    %s59 = scalar_lea.vmem %s0, 6
    %v60 = vld [vmem:[%s59] sm:$0x1]
    %61 = vrot.lane.b32.xlu0 %v60, 48
    %v62 = vpop.permute.xlu0 %61
    %vm63 = vcmask 458112
    %64 = vst.msk [vmem:[#allocation0] sm:$0x1] %vm63, %v62
    %s65 = scalar_lea.vmem %s0, 5
    %v66 = vld [vmem:[%s65] sm:$0x1]
    %67 = vrot.lane.b32.xlu0 %v66, 40
    %v68 = vpop.permute.xlu0 %67
    %vm69 = vcmask 392512
    %70 = vst.msk [vmem:[#allocation0] sm:$0x1] %vm69, %v68
    %s71 = scalar_lea.vmem %s0, 4
    %v72 = vld [vmem:[%s71] sm:$0x1]
    %73 = vrot.lane.b32.xlu0 %v72, 32
    %v74 = vpop.permute.xlu0 %73
    %vm75 = vcmask 326912
    %76 = vst.msk [vmem:[#allocation0] sm:$0x1] %vm75, %v74
    %s77 = scalar_lea.vmem %s0, 3
    %v78 = vld [vmem:[%s77] sm:$0x1]
    %79 = vrot.lane.b32.xlu0 %v78, 24
    %v80 = vpop.permute.xlu0 %79
    %vm81 = vcmask 261312
    %82 = vst.msk [vmem:[#allocation0] sm:$0x1] %vm81, %v80
    %s83 = scalar_lea.vmem %s0, 2
    %v84 = vld [vmem:[%s83] sm:$0x1]
    %85 = vrot.lane.b32.xlu0 %v84, 16
    %v86 = vpop.permute.xlu0 %85
    %vm87 = vcmask 195712
    %88 = vst.msk [vmem:[#allocation0] sm:$0x1] %vm87, %v86
    %s89 = scalar_lea.vmem %s0, 1
    %v90 = vld [vmem:[%s89] sm:$0x1]
    %91 = vrot.lane.b32.xlu0 %v90, 8
    %v92 = vpop.permute.xlu0 %91
    %vm93 = vcmask 130112
    %94 = vst.msk [vmem:[#allocation0] sm:$0x1] %vm93, %v92
    %s96 = ssub.s32 2, 1
    %v97 = vld [vmem:[#allocation0] sm:%s96]
    %s99 = ssub.s32 2, 1
    %100 = vst [vmem:[%s1] sm:%s99] %v97

// kernel: residual_block.1
$region0: #{residual_block.1}
  #allocation0 [shape = 'u32[]', space=smem, size = 0x4, offset = 0x4, fixed_abs, tag = 'smem constant byte address 0x4 - core index']
  #allocation1 [shape = 'u32[72,128]{1,0:T(1,128)}', space=vmem, size = 0x9000, scoped, tag = 'internal scratch']
  #allocation2 [shape = 'f32[38,72]{1,0:T(8,128)}', space=vmem, size = 0x5000, scoped, tag = 'scratch operand']
  #allocation3 [shape = 'f32[38,144]{1,0:T(8,128)}', space=vmem, size = 0xa000, scoped, tag = 'scratch operand']
  %s0 = inlined_call_operand.vmem [shape: f32[2,16,64], index: 0, kind: input, shape index: {}]
  %s1 = inlined_call_operand.vmem [shape: bf16[3,72,272], index: 1, kind: input, shape index: {}]
  %s2 = inlined_call_operand.vmem [shape: bf16[3,144,128], index: 2, kind: input, shape index: {}]
  %s3 = inlined_call_operand.vmem [shape: f32[144,144], index: 3, kind: input, shape index: {}]
  %s4 = inlined_call_operand.vmem [shape: f32[1,144], index: 4, kind: input, shape index: {}]
  %s5 = inlined_call_operand.vmem [shape: f32[1,144], index: 5, kind: input, shape index: {}]
  %s6 = inlined_call_operand.vmem [shape: f32[1,128], index: 6, kind: input, shape index: {}]
  %s7 = inlined_call_operand.vmem [shape: f32[1,128], index: 7, kind: input, shape index: {}]
  %s8 = inlined_call_operand.vmem [shape: f32[36,1], index: 8, kind: input, shape index: {}]
  %s9 = inlined_call_operand.vmem [shape: f32[1,144], index: 9, kind: input, shape index: {}]
  %s10 = inlined_call_operand.vmem [shape: f32[2,16,128], index: 10, kind: output, shape index: {}]
  %s11 = sld [smem:[#allocation0]]
  $region50: #{residual_block.1} parent=0
    _
  %s13 = ssub.s32 1, %s11
  %s14 = scalar_select 0, %s13, %s11
  // Predicated region
  $region2: #{residual_block.1} parent=0 // pred_check
    _
  $region3: #{residual_block.1} parent=0 // pred_check_branch
    %16 = sbr.rel (0) target = $region5
  $region4: #{residual_block.1} parent=0 // pred_region
    _
  $region5: #{residual_block.1} parent=0 // pred_fallthru
    _
  // Predicated region
  $region6: #{residual_block.1} parent=0 // pred_check
    _
  $region7: #{residual_block.1} parent=0 // pred_check_branch
    %18 = sbr.rel (0) target = $region9
  $region8: #{residual_block.1} parent=0 // pred_region
    _
  $region9: #{residual_block.1} parent=0 // pred_fallthru
    _
  // Predicated region
  $region10: #{residual_block.1} parent=0 // pred_check
    _
  $region11: #{residual_block.1} parent=0 // pred_check_branch
    %20 = sbr.rel (0) target = $region13
  $region12: #{residual_block.1} parent=0 // pred_region
    _
  $region13: #{residual_block.1} parent=0 // pred_fallthru
    _
  // Predicated region
  $region14: #{residual_block.1} parent=0 // pred_check
    _
  $region15: #{residual_block.1} parent=0 // pred_check_branch
    %22 = sbr.rel (0) target = $region17
  $region16: #{residual_block.1} parent=0 // pred_region
    _
  $region17: #{residual_block.1} parent=0 // pred_fallthru
    _
  // Predicated region
  $region18: #{residual_block.1} parent=0 // pred_check
    _
  $region19: #{residual_block.1} parent=0 // pred_check_branch
    %24 = sbr.rel (0) target = $region21
  $region20: #{residual_block.1} parent=0 // pred_region
    _
  $region21: #{residual_block.1} parent=0 // pred_fallthru
    _
  // Predicated region
  $region22: #{residual_block.1} parent=0 // pred_check
    _
  $region23: #{residual_block.1} parent=0 // pred_check_branch
    %26 = sbr.rel (0) target = $region25
  $region24: #{residual_block.1} parent=0 // pred_region
    _
  $region25: #{residual_block.1} parent=0 // pred_fallthru
    _
  // Predicated region
  $region26: #{residual_block.1} parent=0 // pred_check
    _
  $region27: #{residual_block.1} parent=0 // pred_check_branch
    %28 = sbr.rel (0) target = $region29
  $region28: #{residual_block.1} parent=0 // pred_region
    _
  $region29: #{residual_block.1} parent=0 // pred_fallthru
    _
  // Predicated region
  $region30: #{residual_block.1} parent=0 // pred_check
    _
  $region31: #{residual_block.1} parent=0 // pred_check_branch
    %30 = sbr.rel (0) target = $region33
  $region32: #{residual_block.1} parent=0 // pred_region
    _
  $region33: #{residual_block.1} parent=0 // pred_fallthru
    _
  // Predicated region
  $region34: #{residual_block.1} parent=0 // pred_check
    _
  $region35: #{residual_block.1} parent=0 // pred_check_branch
    %32 = sbr.rel (0) target = $region37
  $region36: #{residual_block.1} parent=0 // pred_region
    _
  $region37: #{residual_block.1} parent=0 // pred_fallthru
    _
  // Predicated region
  $region38: #{residual_block.1} parent=0 // pred_check
    _
  $region39: #{residual_block.1} parent=0 // pred_check_branch
    %34 = sbr.rel (0) target = $region41
  $region40: #{residual_block.1} parent=0 // pred_region
    _
  $region41: #{residual_block.1} parent=0 // pred_fallthru
    _
  %vm36 = vcmask 588800
  %37 = vst.msk [vmem:[#allocation2] sm:$0xff] %vm36, 0.0
  %38 = vst.msk [vmem:[#allocation2 + $0x8] sm:$0xff] %vm36, 0.0
  %39 = vst.msk [vmem:[#allocation2 + $0x10] sm:$0xff] %vm36, 0.0
  %40 = vst.msk [vmem:[#allocation2 + $0x18] sm:$0xff] %vm36, 0.0
  %vm41 = vcmask 586752
  %42 = vst.msk [vmem:[#allocation2 + $0x20] sm:$0x3f] %vm41, 0.0
  %43 = vst [vmem:[#allocation3] sm:$0xff] 0.0
  %vm44 = vcmask 130048
  %45 = vst.msk [vmem:[#allocation3 + $0x8] sm:$0xff] %vm44, 0.0
  %46 = vst [vmem:[#allocation3 + $0x10] sm:$0xff] 0.0
  %47 = vst.msk [vmem:[#allocation3 + $0x18] sm:$0xff] %vm44, 0.0
  %48 = vst [vmem:[#allocation3 + $0x20] sm:$0xff] 0.0
  %49 = vst.msk [vmem:[#allocation3 + $0x28] sm:$0xff] %vm44, 0.0
  %50 = vst [vmem:[#allocation3 + $0x30] sm:$0xff] 0.0
  %51 = vst.msk [vmem:[#allocation3 + $0x38] sm:$0xff] %vm44, 0.0
  %52 = vst [vmem:[#allocation3 + $0x40] sm:$0x3f] 0.0
  %vm53 = vcmask 128000
  %54 = vst.msk [vmem:[#allocation3 + $0x48] sm:$0x3f] %vm53, 0.0
  %v55 = vld [vmem:[%s0] sm:$0xff]
  %v56 = vld [vmem:[%s0 + $0x8] sm:$0xff]
  %59 = vrot.lane.b32.xlu0 %v55, 4
  %v60 = vpop.permute.xlu0 %59
  %61 = vrot.lane.b32.xlu0 %v56, 4
  %v62 = vpop.permute.xlu0 %61
  %vm65 = vcmask 556064
  %66 = vst.msk [vmem:[#allocation2 + $0x1] sm:$0xff] %vm65, %v60
  %67 = vst.msk [vmem:[#allocation2 + $0x9] sm:$0xff] %vm65, %v62
  %s68 = scalar_lea.vmem %s0, 16
  %v69 = vld [vmem:[%s68] sm:$0xff]
  %v70 = vld [vmem:[%s68 + $0x8] sm:$0xff]
  %73 = vrot.lane.b32.xlu0 %v69, 4
  %v74 = vpop.permute.xlu0 %73
  %75 = vrot.lane.b32.xlu0 %v70, 4
  %v76 = vpop.permute.xlu0 %75
  %79 = vst.msk [vmem:[#allocation2 + $0x13] sm:$0xff] %vm65, %v74
  %80 = vst.msk [vmem:[#allocation2 + $0x1b] sm:$0xff] %vm65, %v76
  %v81 = vld [vmem:[#allocation2] sm:$0xff]
  %v82 = vld [vmem:[#allocation2 + $0x8] sm:$0xff]
  %v83 = vld [vmem:[#allocation2 + $0x10] sm:$0xff]
  %v84 = vld [vmem:[#allocation2 + $0x18] sm:$0xff]
  %v85 = vld [vmem:[#allocation2 + $0x20] sm:$0xf]
  %v86 = vpack.c.bf16 %v82, %v81
  %v87 = vpack.c.bf16 %v84, %v83
  %v88 = vpack.c.bf16 %v85, %v85
  %v89 = vld [vmem:[%s1] sm:$0xff]
  %v90 = vld [vmem:[%s1 + $0x8] sm:$0xf]
  %v91 = vld [vmem:[%s1 + $0xc] sm:$0xff]
  %v92 = vld [vmem:[%s1 + $0x14] sm:$0xf]
  %v93 = vld [vmem:[%s1 + $0x18] sm:$0xff]
  %v94 = vld [vmem:[%s1 + $0x20] sm:$0xf]
  %v95 = vld [vmem:[%s1 + $0x24] sm:$0xff]
  %v96 = vld [vmem:[%s1 + $0x2c] sm:$0xf]
  %v97 = vld [vmem:[%s1 + $0x30] sm:$0xff]
  %v98 = vld [vmem:[%s1 + $0x38] sm:$0xf]
  %v99 = vld [vmem:[%s1 + $0x3c] sm:$0xff]
  %v100 = vld [vmem:[%s1 + $0x44] sm:$0xf]
  %v101 = vld [vmem:[%s1 + $0x48] sm:$0xff]
  %v102 = vld [vmem:[%s1 + $0x50] sm:$0xf]
  %v103 = vld [vmem:[%s1 + $0x54] sm:$0xff]
  %v104 = vld [vmem:[%s1 + $0x5c] sm:$0xf]
  %v105 = vld [vmem:[%s1 + $0x60] sm:$0xff]
  %v106 = vld [vmem:[%s1 + $0x68] sm:$0xf]
  %v107 = vld [vmem:[#allocation2 + $0x1] sm:$0xff]
  %v108 = vld [vmem:[#allocation2 + $0x9] sm:$0xff]
  %v109 = vld [vmem:[#allocation2 + $0x11] sm:$0xff]
  %v110 = vld [vmem:[#allocation2 + $0x19] sm:$0xff]
  %v111 = vld [vmem:[#allocation2 + $0x21] sm:$0xf]
  %v112 = vpack.c.bf16 %v108, %v107
  %v113 = vpack.c.bf16 %v110, %v109
  %v114 = vpack.c.bf16 %v111, %v111
  %s115 = scalar_lea.vmem %s1, 108
  %v116 = vld [vmem:[%s115] sm:$0xff]
  %v117 = vld [vmem:[%s115 + $0x8] sm:$0xf]
  %v118 = vld [vmem:[%s115 + $0xc] sm:$0xff]
  %v119 = vld [vmem:[%s115 + $0x14] sm:$0xf]
  %v120 = vld [vmem:[%s115 + $0x18] sm:$0xff]
  %v121 = vld [vmem:[%s115 + $0x20] sm:$0xf]
  %v122 = vld [vmem:[%s115 + $0x24] sm:$0xff]
  %v123 = vld [vmem:[%s115 + $0x2c] sm:$0xf]
  %v124 = vld [vmem:[%s115 + $0x30] sm:$0xff]
  %v125 = vld [vmem:[%s115 + $0x38] sm:$0xf]
  %v126 = vld [vmem:[%s115 + $0x3c] sm:$0xff]
  %v127 = vld [vmem:[%s115 + $0x44] sm:$0xf]
  %v128 = vld [vmem:[%s115 + $0x48] sm:$0xff]
  %v129 = vld [vmem:[%s115 + $0x50] sm:$0xf]
  %v130 = vld [vmem:[%s115 + $0x54] sm:$0xff]
  %v131 = vld [vmem:[%s115 + $0x5c] sm:$0xf]
  %v132 = vld [vmem:[%s115 + $0x60] sm:$0xff]
  %v133 = vld [vmem:[%s115 + $0x68] sm:$0xf]
  %v152 = vunpack.c.l.b16 %v116
  %v153 = vunpack.c.h.b16 %v116
  %v154 = vunpack.c.l.b16 %v117
  %v155 = vunpack.c.l.b16 %v118
  %v156 = vunpack.c.h.b16 %v118
  %v157 = vunpack.c.l.b16 %v119
  %v158 = vunpack.c.l.b16 %v120
  %v159 = vunpack.c.h.b16 %v120
  %v160 = vunpack.c.l.b16 %v121
  %v161 = vunpack.c.l.b16 %v122
  %v162 = vunpack.c.h.b16 %v122
  %v163 = vunpack.c.l.b16 %v123
  %v164 = vunpack.c.l.b16 %v124
  %v165 = vunpack.c.h.b16 %v124
  %v166 = vunpack.c.l.b16 %v125
  %v167 = vunpack.c.l.b16 %v126
  %v168 = vunpack.c.h.b16 %v126
  %v169 = vunpack.c.l.b16 %v127
  %v170 = vunpack.c.l.b16 %v128
  %v171 = vunpack.c.h.b16 %v128
  %v172 = vunpack.c.l.b16 %v129
  %v173 = vunpack.c.l.b16 %v130
  %v174 = vunpack.c.h.b16 %v130
  %v175 = vunpack.c.l.b16 %v131
  %v176 = vunpack.c.l.b16 %v132
  %v177 = vunpack.c.h.b16 %v132
  %v178 = vunpack.c.l.b16 %v133
  %v179 = vpack.c.b16 %v155, %v152
  %v180 = vpack.c.b16 %v156, %v153
  %v181 = vpack.c.b16 %v157, %v154
  %v182 = vpack.c.b16 %v161, %v158
  %v183 = vpack.c.b16 %v162, %v159
  %v184 = vpack.c.b16 %v163, %v160
  %v185 = vpack.c.b16 %v167, %v164
  %v186 = vpack.c.b16 %v168, %v165
  %v187 = vpack.c.b16 %v169, %v166
  %v188 = vpack.c.b16 %v173, %v170
  %v189 = vpack.c.b16 %v174, %v171
  %v190 = vpack.c.b16 %v175, %v172
  %v191 = vpack.c.b16 %v176, %v176
  %v192 = vpack.c.b16 %v177, %v177
  %v193 = vpack.c.b16 %v178, %v178
  %v207 = vsel %vm36, %v112, 0
  %v210 = vsel %vm36, %v113, 0
  %v213 = vsel %vm36, %v114, 0
  %vm215 = vcmask 1043456
  %v217 = vsel %vm215, %v191, 0
  %v220 = vsel %vm215, %v192, 0
  %v223 = vsel %vm215, %v193, 0
  %225 = vmatpush.bf16.msra.mxu0 0
  %226 = vmatpush.bf16.msra.mxu0 0
  %227 = vmatpush.bf16.msra.mxu0 0
  %228 = vmatpush.bf16.msra.mxu0 %v217
  %229 = vmatpush.bf16.msra.mxu0 %v188
  %230 = vmatpush.bf16.msra.mxu0 %v185
  %231 = vmatpush.bf16.msra.mxu0 %v182
  %232 = vmatpush.bf16.msra.mxu0 %v179
  %233 = vmatmul.bf16.gmra.mxu0 %v207
  %v234 = vpop.f32.mrf.mxu0
  %v235 = vadd.f32 0.0, %v234
  %v236 = vpop.f32.mrf.mxu0
  %v237 = vadd.f32 0.0, %v236
  %238 = vmatmul.bf16.gmra.mxu0 %v210
  %v239 = vpop.f32.mrf.mxu0
  %v240 = vadd.f32 0.0, %v239
  %v241 = vpop.f32.mrf.mxu0
  %v242 = vadd.f32 0.0, %v241
  %243 = vmatmul.bf16.gmra.mxu0 %v213
  %v244 = vpop.f32.mrf.mxu0
  %v245 = vadd.f32 0.0, %v244
  %v246 = vpop.f32.mrf.mxu0
  %247 = vdwg.mxu0
  %248 = vmatpush.bf16.msra.mxu0 0
  %249 = vmatpush.bf16.msra.mxu0 0
  %250 = vmatpush.bf16.msra.mxu0 0
  %251 = vmatpush.bf16.msra.mxu0 %v220
  %252 = vmatpush.bf16.msra.mxu0 %v189
  %253 = vmatpush.bf16.msra.mxu0 %v186
  %254 = vmatpush.bf16.msra.mxu0 %v183
  %255 = vmatpush.bf16.msra.mxu0 %v180
  %256 = vmatmul.bf16.gmra.mxu0 %v207
  %v257 = vpop.f32.mrf.mxu0
  %v258 = vadd.f32 0.0, %v257
  %v259 = vpop.f32.mrf.mxu0
  %v260 = vadd.f32 0.0, %v259
  %261 = vmatmul.bf16.gmra.mxu0 %v210
  %v262 = vpop.f32.mrf.mxu0
  %v263 = vadd.f32 0.0, %v262
  %v264 = vpop.f32.mrf.mxu0
  %v265 = vadd.f32 0.0, %v264
  %266 = vmatmul.bf16.gmra.mxu0 %v213
  %v267 = vpop.f32.mrf.mxu0
  %v268 = vadd.f32 0.0, %v267
  %v269 = vpop.f32.mrf.mxu0
  %270 = vdwg.mxu0
  %271 = vmatpush.bf16.msra.mxu0 0
  %272 = vmatpush.bf16.msra.mxu0 0
  %273 = vmatpush.bf16.msra.mxu0 0
  %274 = vmatpush.bf16.msra.mxu0 %v223
  %275 = vmatpush.bf16.msra.mxu0 %v190
  %276 = vmatpush.bf16.msra.mxu0 %v187
  %277 = vmatpush.bf16.msra.mxu0 %v184
  %278 = vmatpush.bf16.msra.mxu0 %v181
  %279 = vmatmul.bf16.gmra.mxu0 %v207
  %v280 = vpop.f32.mrf.mxu0
  %v281 = vadd.f32 0.0, %v280
  %v282 = vpop.f32.mrf.mxu0
  %v283 = vadd.f32 0.0, %v282
  %284 = vmatmul.bf16.gmra.mxu0 %v210
  %v285 = vpop.f32.mrf.mxu0
  %v286 = vadd.f32 0.0, %v285
  %v287 = vpop.f32.mrf.mxu0
  %v288 = vadd.f32 0.0, %v287
  %289 = vmatmul.bf16.gmra.mxu0 %v213
  %v290 = vpop.f32.mrf.mxu0
  %v291 = vadd.f32 0.0, %v290
  %v292 = vpop.f32.mrf.mxu0
  %293 = vdwg.mxu0
  %v312 = vunpack.c.l.b16 %v89
  %v313 = vunpack.c.h.b16 %v89
  %v314 = vunpack.c.l.b16 %v90
  %v315 = vunpack.c.l.b16 %v91
  %v316 = vunpack.c.h.b16 %v91
  %v317 = vunpack.c.l.b16 %v92
  %v318 = vunpack.c.l.b16 %v93
  %v319 = vunpack.c.h.b16 %v93
  %v320 = vunpack.c.l.b16 %v94
  %v321 = vunpack.c.l.b16 %v95
  %v322 = vunpack.c.h.b16 %v95
  %v323 = vunpack.c.l.b16 %v96
  %v324 = vunpack.c.l.b16 %v97
  %v325 = vunpack.c.h.b16 %v97
  %v326 = vunpack.c.l.b16 %v98
  %v327 = vunpack.c.l.b16 %v99
  %v328 = vunpack.c.h.b16 %v99
  %v329 = vunpack.c.l.b16 %v100
  %v330 = vunpack.c.l.b16 %v101
  %v331 = vunpack.c.h.b16 %v101
  %v332 = vunpack.c.l.b16 %v102
  %v333 = vunpack.c.l.b16 %v103
  %v334 = vunpack.c.h.b16 %v103
  %v335 = vunpack.c.l.b16 %v104
  %v336 = vunpack.c.l.b16 %v105
  %v337 = vunpack.c.h.b16 %v105
  %v338 = vunpack.c.l.b16 %v106
  %v339 = vpack.c.b16 %v315, %v312
  %v340 = vpack.c.b16 %v316, %v313
  %v341 = vpack.c.b16 %v317, %v314
  %v342 = vpack.c.b16 %v321, %v318
  %v343 = vpack.c.b16 %v322, %v319
  %v344 = vpack.c.b16 %v323, %v320
  %v345 = vpack.c.b16 %v327, %v324
  %v346 = vpack.c.b16 %v328, %v325
  %v347 = vpack.c.b16 %v329, %v326
  %v348 = vpack.c.b16 %v333, %v330
  %v349 = vpack.c.b16 %v334, %v331
  %v350 = vpack.c.b16 %v335, %v332
  %v351 = vpack.c.b16 %v336, %v336
  %v352 = vpack.c.b16 %v337, %v337
  %v353 = vpack.c.b16 %v338, %v338
  %v367 = vsel %vm36, %v86, 0
  %v370 = vsel %vm36, %v87, 0
  %v373 = vsel %vm36, %v88, 0
  %v376 = vsel %vm215, %v351, 0
  %v379 = vsel %vm215, %v352, 0
  %v382 = vsel %vm215, %v353, 0
  %384 = vmatpush.bf16.msra.mxu0 0
  %385 = vmatpush.bf16.msra.mxu0 0
  %386 = vmatpush.bf16.msra.mxu0 0
  %387 = vmatpush.bf16.msra.mxu0 %v376
  %388 = vmatpush.bf16.msra.mxu0 %v348
  %389 = vmatpush.bf16.msra.mxu0 %v345
  %390 = vmatpush.bf16.msra.mxu0 %v342
  %391 = vmatpush.bf16.msra.mxu0 %v339
  %392 = vmatmul.bf16.gmra.mxu0 %v367
  %v393 = vpop.f32.mrf.mxu0
  %v394 = vadd.f32 %v235, %v393
  %v395 = vpop.f32.mrf.mxu0
  %v396 = vadd.f32 %v237, %v395
  %397 = vmatmul.bf16.gmra.mxu0 %v370
  %v398 = vpop.f32.mrf.mxu0
  %v399 = vadd.f32 %v240, %v398
  %v400 = vpop.f32.mrf.mxu0
  %v401 = vadd.f32 %v242, %v400
  %402 = vmatmul.bf16.gmra.mxu0 %v373
  %v403 = vpop.f32.mrf.mxu0
  %v404 = vadd.f32 %v245, %v403
  %v405 = vpop.f32.mrf.mxu0
  %406 = vdwg.mxu0
  %407 = vmatpush.bf16.msra.mxu0 0
  %408 = vmatpush.bf16.msra.mxu0 0
  %409 = vmatpush.bf16.msra.mxu0 0
  %410 = vmatpush.bf16.msra.mxu0 %v379
  %411 = vmatpush.bf16.msra.mxu0 %v349
  %412 = vmatpush.bf16.msra.mxu0 %v346
  %413 = vmatpush.bf16.msra.mxu0 %v343
  %414 = vmatpush.bf16.msra.mxu0 %v340
  %415 = vmatmul.bf16.gmra.mxu0 %v367
  %v416 = vpop.f32.mrf.mxu0
  %v417 = vadd.f32 %v258, %v416
  %v418 = vpop.f32.mrf.mxu0
  %v419 = vadd.f32 %v260, %v418
  %420 = vmatmul.bf16.gmra.mxu0 %v370
  %v421 = vpop.f32.mrf.mxu0
  %v422 = vadd.f32 %v263, %v421
  %v423 = vpop.f32.mrf.mxu0
  %v424 = vadd.f32 %v265, %v423
  %425 = vmatmul.bf16.gmra.mxu0 %v373
  %v426 = vpop.f32.mrf.mxu0
  %v427 = vadd.f32 %v268, %v426
  %v428 = vpop.f32.mrf.mxu0
  %429 = vdwg.mxu0
  %430 = vmatpush.bf16.msra.mxu0 0
  %431 = vmatpush.bf16.msra.mxu0 0
  %432 = vmatpush.bf16.msra.mxu0 0
  %433 = vmatpush.bf16.msra.mxu0 %v382
  %434 = vmatpush.bf16.msra.mxu0 %v350
  %435 = vmatpush.bf16.msra.mxu0 %v347
  %436 = vmatpush.bf16.msra.mxu0 %v344
  %437 = vmatpush.bf16.msra.mxu0 %v341
  %438 = vmatmul.bf16.gmra.mxu0 %v367
  %v439 = vpop.f32.mrf.mxu0
  %v440 = vadd.f32 %v281, %v439
  %v441 = vpop.f32.mrf.mxu0
  %v442 = vadd.f32 %v283, %v441
  %443 = vmatmul.bf16.gmra.mxu0 %v370
  %v444 = vpop.f32.mrf.mxu0
  %v445 = vadd.f32 %v286, %v444
  %v446 = vpop.f32.mrf.mxu0
  %v447 = vadd.f32 %v288, %v446
  %448 = vmatmul.bf16.gmra.mxu0 %v373
  %v449 = vpop.f32.mrf.mxu0
  %v450 = vadd.f32 %v291, %v449
  %v451 = vpop.f32.mrf.mxu0
  %452 = vdwg.mxu0
  %v453 = vld [vmem:[#allocation2 + $0x2] sm:$0xff]
  %v454 = vld [vmem:[#allocation2 + $0xa] sm:$0xff]
  %v455 = vld [vmem:[#allocation2 + $0x12] sm:$0xff]
  %v456 = vld [vmem:[#allocation2 + $0x1a] sm:$0xff]
  %v457 = vld [vmem:[#allocation2 + $0x22] sm:$0xf]
  %v458 = vpack.c.bf16 %v454, %v453
  %v459 = vpack.c.bf16 %v456, %v455
  %v460 = vpack.c.bf16 %v457, %v457
  %s461 = scalar_lea.vmem %s1, 216
  %v462 = vld [vmem:[%s461] sm:$0xff]
  %v463 = vld [vmem:[%s461 + $0x8] sm:$0xf]
  %v464 = vld [vmem:[%s461 + $0xc] sm:$0xff]
  %v465 = vld [vmem:[%s461 + $0x14] sm:$0xf]
  %v466 = vld [vmem:[%s461 + $0x18] sm:$0xff]
  %v467 = vld [vmem:[%s461 + $0x20] sm:$0xf]
  %v468 = vld [vmem:[%s461 + $0x24] sm:$0xff]
  %v469 = vld [vmem:[%s461 + $0x2c] sm:$0xf]
  %v470 = vld [vmem:[%s461 + $0x30] sm:$0xff]
  %v471 = vld [vmem:[%s461 + $0x38] sm:$0xf]
  %v472 = vld [vmem:[%s461 + $0x3c] sm:$0xff]
  %v473 = vld [vmem:[%s461 + $0x44] sm:$0xf]
  %v474 = vld [vmem:[%s461 + $0x48] sm:$0xff]
  %v475 = vld [vmem:[%s461 + $0x50] sm:$0xf]
  %v476 = vld [vmem:[%s461 + $0x54] sm:$0xff]
  %v477 = vld [vmem:[%s461 + $0x5c] sm:$0xf]
  %v478 = vld [vmem:[%s461 + $0x60] sm:$0xff]
  %v479 = vld [vmem:[%s461 + $0x68] sm:$0xf]
  %v498 = vunpack.c.l.b16 %v462
  %v499 = vunpack.c.h.b16 %v462
  %v500 = vunpack.c.l.b16 %v463
  %v501 = vunpack.c.l.b16 %v464
  %v502 = vunpack.c.h.b16 %v464
  %v503 = vunpack.c.l.b16 %v465
  %v504 = vunpack.c.l.b16 %v466
  %v505 = vunpack.c.h.b16 %v466
  %v506 = vunpack.c.l.b16 %v467
  %v507 = vunpack.c.l.b16 %v468
  %v508 = vunpack.c.h.b16 %v468
  %v509 = vunpack.c.l.b16 %v469
  %v510 = vunpack.c.l.b16 %v470
  %v511 = vunpack.c.h.b16 %v470
  %v512 = vunpack.c.l.b16 %v471
  %v513 = vunpack.c.l.b16 %v472
  %v514 = vunpack.c.h.b16 %v472
  %v515 = vunpack.c.l.b16 %v473
  %v516 = vunpack.c.l.b16 %v474
  %v517 = vunpack.c.h.b16 %v474
  %v518 = vunpack.c.l.b16 %v475
  %v519 = vunpack.c.l.b16 %v476
  %v520 = vunpack.c.h.b16 %v476
  %v521 = vunpack.c.l.b16 %v477
  %v522 = vunpack.c.l.b16 %v478
  %v523 = vunpack.c.h.b16 %v478
  %v524 = vunpack.c.l.b16 %v479
  %v525 = vpack.c.b16 %v501, %v498
  %v526 = vpack.c.b16 %v502, %v499
  %v527 = vpack.c.b16 %v503, %v500
  %v528 = vpack.c.b16 %v507, %v504
  %v529 = vpack.c.b16 %v508, %v505
  %v530 = vpack.c.b16 %v509, %v506
  %v531 = vpack.c.b16 %v513, %v510
  %v532 = vpack.c.b16 %v514, %v511
  %v533 = vpack.c.b16 %v515, %v512
  %v534 = vpack.c.b16 %v519, %v516
  %v535 = vpack.c.b16 %v520, %v517
  %v536 = vpack.c.b16 %v521, %v518
  %v537 = vpack.c.b16 %v522, %v522
  %v538 = vpack.c.b16 %v523, %v523
  %v539 = vpack.c.b16 %v524, %v524
  %v553 = vsel %vm36, %v458, 0
  %v556 = vsel %vm36, %v459, 0
  %v559 = vsel %vm36, %v460, 0
  %v562 = vsel %vm215, %v537, 0
  %v565 = vsel %vm215, %v538, 0
  %v568 = vsel %vm215, %v539, 0
  %570 = vmatpush.bf16.msra.mxu0 0
  %571 = vmatpush.bf16.msra.mxu0 0
  %572 = vmatpush.bf16.msra.mxu0 0
  %573 = vmatpush.bf16.msra.mxu0 %v562
  %574 = vmatpush.bf16.msra.mxu0 %v534
  %575 = vmatpush.bf16.msra.mxu0 %v531
  %576 = vmatpush.bf16.msra.mxu0 %v528
  %577 = vmatpush.bf16.msra.mxu0 %v525
  %578 = vmatmul.bf16.gmra.mxu0 %v553
  %v579 = vpop.f32.mrf.mxu0
  %v580 = vadd.f32 0.0, %v579
  %v581 = vpop.f32.mrf.mxu0
  %v582 = vadd.f32 0.0, %v581
  %583 = vmatmul.bf16.gmra.mxu0 %v556
  %v584 = vpop.f32.mrf.mxu0
  %v585 = vadd.f32 0.0, %v584
  %v586 = vpop.f32.mrf.mxu0
  %v587 = vadd.f32 0.0, %v586
  %588 = vmatmul.bf16.gmra.mxu0 %v559
  %v589 = vpop.f32.mrf.mxu0
  %v590 = vadd.f32 0.0, %v589
  %v591 = vpop.f32.mrf.mxu0
  %592 = vdwg.mxu0
  %593 = vmatpush.bf16.msra.mxu0 0
  %594 = vmatpush.bf16.msra.mxu0 0
  %595 = vmatpush.bf16.msra.mxu0 0
  %596 = vmatpush.bf16.msra.mxu0 %v565
  %597 = vmatpush.bf16.msra.mxu0 %v535
  %598 = vmatpush.bf16.msra.mxu0 %v532
  %599 = vmatpush.bf16.msra.mxu0 %v529
  %600 = vmatpush.bf16.msra.mxu0 %v526
  %601 = vmatmul.bf16.gmra.mxu0 %v553
  %v602 = vpop.f32.mrf.mxu0
  %v603 = vadd.f32 0.0, %v602
  %v604 = vpop.f32.mrf.mxu0
  %v605 = vadd.f32 0.0, %v604
  %606 = vmatmul.bf16.gmra.mxu0 %v556
  %v607 = vpop.f32.mrf.mxu0
  %v608 = vadd.f32 0.0, %v607
  %v609 = vpop.f32.mrf.mxu0
  %v610 = vadd.f32 0.0, %v609
  %611 = vmatmul.bf16.gmra.mxu0 %v559
  %v612 = vpop.f32.mrf.mxu0
  %v613 = vadd.f32 0.0, %v612
  %v614 = vpop.f32.mrf.mxu0
  %615 = vdwg.mxu0
  %616 = vmatpush.bf16.msra.mxu0 0
  %617 = vmatpush.bf16.msra.mxu0 0
  %618 = vmatpush.bf16.msra.mxu0 0
  %619 = vmatpush.bf16.msra.mxu0 %v568
  %620 = vmatpush.bf16.msra.mxu0 %v536
  %621 = vmatpush.bf16.msra.mxu0 %v533
  %622 = vmatpush.bf16.msra.mxu0 %v530
  %623 = vmatpush.bf16.msra.mxu0 %v527
  %624 = vmatmul.bf16.gmra.mxu0 %v553
  %v625 = vpop.f32.mrf.mxu0
  %v626 = vadd.f32 0.0, %v625
  %v627 = vpop.f32.mrf.mxu0
  %v628 = vadd.f32 0.0, %v627
  %629 = vmatmul.bf16.gmra.mxu0 %v556
  %v630 = vpop.f32.mrf.mxu0
  %v631 = vadd.f32 0.0, %v630
  %v632 = vpop.f32.mrf.mxu0
  %v633 = vadd.f32 0.0, %v632
  %634 = vmatmul.bf16.gmra.mxu0 %v559
  %v635 = vpop.f32.mrf.mxu0
  %v636 = vadd.f32 0.0, %v635
  %v637 = vpop.f32.mrf.mxu0
  %638 = vdwg.mxu0
  %v639 = vadd.f32 %v394, %v580
  %v640 = vadd.f32 %v417, %v603
  %v641 = vadd.f32 %v440, %v626
  %v642 = vadd.f32 %v396, %v582
  %v643 = vadd.f32 %v419, %v605
  %v644 = vadd.f32 %v442, %v628
  %v645 = vadd.f32 %v399, %v585
  %v646 = vadd.f32 %v422, %v608
  %v647 = vadd.f32 %v445, %v631
  %v648 = vadd.f32 %v401, %v587
  %v649 = vadd.f32 %v424, %v610
  %v650 = vadd.f32 %v447, %v633
  %v651 = vadd.f32 %v404, %v590
  %v652 = vadd.f32 %v427, %v613
  %v653 = vadd.f32 %v450, %v636
  %v654 = vld [vmem:[%s8] sm:$0xff]
  %v655 = vld [vmem:[%s8 + $0x8] sm:$0xff]
  %v656 = vld [vmem:[%s8 + $0x10] sm:$0xff]
  %v657 = vld [vmem:[%s8 + $0x18] sm:$0xff]
  %v658 = vld [vmem:[%s8 + $0x20] sm:$0xf]
  %v659 = vld [vmem:[%s9] sm:$0x3]
  %661 = vset.pattern.permute.xlu0 0
  %662 = vperm.xlu0 %661, %v654
  %v663 = vpop.permute.xlu0 %662
  %666 = vset.pattern.permute.xlu0 0
  %667 = vperm.xlu0 %666, %v655
  %v668 = vpop.permute.xlu0 %667
  %671 = vset.pattern.permute.xlu0 0
  %672 = vperm.xlu0 %671, %v656
  %v673 = vpop.permute.xlu0 %672
  %676 = vset.pattern.permute.xlu0 0
  %677 = vperm.xlu0 %676, %v657
  %v678 = vpop.permute.xlu0 %677
  %681 = vset.pattern.permute.xlu0 0
  %682 = vperm.xlu0 %681, %v658
  %v683 = vpop.permute.xlu0 %682
  %v686 = vperm.slane %v659, 0
  %v687 = vperm.slane %v659, 1
  %v690 = vmul.f32 %v663, %v686
  %v691 = vmul.f32 %v663, %v687
  %v692 = vmul.f32 %v668, %v686
  %v693 = vmul.f32 %v668, %v687
  %v694 = vmul.f32 %v673, %v686
  %v695 = vmul.f32 %v673, %v687
  %v696 = vmul.f32 %v678, %v686
  %v697 = vmul.f32 %v678, %v687
  %v698 = vmul.f32 %v683, %v686
  %v699 = vmul.f32 %v683, %v687
  %v700 = vld [vmem:[%s3] sm:$0xff]
  %v701 = vld [vmem:[%s3 + $0x8] sm:$0xff]
  %v702 = vld [vmem:[%s3 + $0x10] sm:$0xff]
  %v703 = vld [vmem:[%s3 + $0x18] sm:$0xff]
  %v704 = vld [vmem:[%s3 + $0x20] sm:$0xff]
  %v705 = vld [vmem:[%s3 + $0x28] sm:$0xff]
  %v706 = vld [vmem:[%s3 + $0x30] sm:$0xff]
  %v707 = vld [vmem:[%s3 + $0x38] sm:$0xff]
  %v708 = vld [vmem:[%s3 + $0x40] sm:$0xff]
  %v709 = vld [vmem:[%s3 + $0x48] sm:$0xff]
  %v710 = vld [vmem:[%s3 + $0x50] sm:$0xff]
  %v711 = vld [vmem:[%s3 + $0x58] sm:$0xff]
  %v712 = vld [vmem:[%s3 + $0x60] sm:$0xff]
  %v713 = vld [vmem:[%s3 + $0x68] sm:$0xff]
  %v714 = vld [vmem:[%s3 + $0x70] sm:$0xff]
  %v715 = vld [vmem:[%s3 + $0x78] sm:$0xff]
  %v716 = vld [vmem:[%s3 + $0x80] sm:$0xff]
  %v717 = vld [vmem:[%s3 + $0x88] sm:$0xff]
  %v718 = vld [vmem:[%s3 + $0x90] sm:$0xff]
  %v719 = vld [vmem:[%s3 + $0x98] sm:$0xff]
  %v720 = vld [vmem:[%s3 + $0xa0] sm:$0xff]
  %v721 = vld [vmem:[%s3 + $0xa8] sm:$0xff]
  %v722 = vld [vmem:[%s3 + $0xb0] sm:$0xff]
  %v723 = vld [vmem:[%s3 + $0xb8] sm:$0xff]
  %v724 = vld [vmem:[%s3 + $0xc0] sm:$0xff]
  %v725 = vld [vmem:[%s3 + $0xc8] sm:$0xff]
  %v726 = vld [vmem:[%s3 + $0xd0] sm:$0xff]
  %v727 = vld [vmem:[%s3 + $0xd8] sm:$0xff]
  %v728 = vld [vmem:[%s3 + $0xe0] sm:$0xff]
  %v729 = vld [vmem:[%s3 + $0xe8] sm:$0xff]
  %v730 = vld [vmem:[%s3 + $0xf0] sm:$0xff]
  %v731 = vld [vmem:[%s3 + $0xf8] sm:$0xff]
  %v732 = vld [vmem:[%s3 + $0x100] sm:$0xff]
  %v733 = vld [vmem:[%s3 + $0x108] sm:$0xff]
  %v734 = vld [vmem:[%s3 + $0x110] sm:$0xff]
  %v735 = vld [vmem:[%s3 + $0x118] sm:$0xff]
  %v736 = vmul.f32 %v640, %v663
  %v737 = vmul.f32 %v641, %v663
  %v738 = vmul.f32 %v643, %v668
  %v739 = vmul.f32 %v644, %v668
  %v740 = vmul.f32 %v646, %v673
  %v741 = vmul.f32 %v647, %v673
  %v742 = vmul.f32 %v649, %v678
  %v743 = vmul.f32 %v650, %v678
  %v744 = vmul.f32 %v652, %v683
  %v745 = vmul.f32 %v653, %v683
  %v746 = vadd.f32 %v736, %v738
  %v747 = vadd.f32 %v746, %v740
  %v748 = vadd.f32 %v747, %v742
  %v749 = vsel %vm215, %v744, 0.0
  %v750 = vadd.f32 %v748, %v749
  %v751 = vrot.slane %v750, 4
  %v752 = vadd.f32 %v750, %v751
  %v753 = vrot.slane %v752, 2
  %v754 = vadd.f32 %v752, %v753
  %v755 = vrot.slane %v754, 1
  %v756 = vadd.f32 %v754, %v755
  %v757 = vsel %vm44, %v737, 0.0
  %v758 = vsel %vm44, %v739, 0.0
  %v759 = vadd.f32 %v757, %v758
  %v760 = vsel %vm44, %v741, 0.0
  %v761 = vadd.f32 %v759, %v760
  %v762 = vsel %vm44, %v743, 0.0
  %v763 = vadd.f32 %v761, %v762
  %vm764 = vcmask 125952
  %v765 = vsel %vm764, %v745, 0.0
  %v766 = vadd.f32 %v763, %v765
  %v767 = vrot.slane %v766, 4
  %v768 = vadd.f32 %v766, %v767
  %v769 = vrot.slane %v768, 2
  %v770 = vadd.f32 %v768, %v769
  %v771 = vrot.slane %v770, 1
  %v772 = vadd.f32 %v770, %v771
  %v774 = vsel %vm44, %v772, 0
  %776 = vmatpush.msra.mxu0 %v730
  %777 = vmatpush.msra.mxu0 %v728
  %778 = vmatpush.msra.mxu0 %v726
  %779 = vmatpush.msra.mxu0 %v724
  %780 = vmatpush.msra.mxu0 %v722
  %781 = vmatpush.msra.mxu0 %v720
  %782 = vmatpush.msra.mxu0 %v718
  %783 = vmatpush.msra.mxu0 %v716
  %784 = vmatpush.msra.mxu0 %v714
  %785 = vmatpush.msra.mxu0 %v712
  %786 = vmatpush.msra.mxu0 %v710
  %787 = vmatpush.msra.mxu0 %v708
  %788 = vmatpush.msra.mxu0 %v706
  %789 = vmatpush.msra.mxu0 %v704
  %790 = vmatpush.msra.mxu0 %v702
  %791 = vmatpush.msra.mxu0 %v700
  %792 = vmatmul.f32.gmra.mxu0 %v756
  %v793 = vpop.f32.mrf.mxu0
  %v794 = vadd.f32 0.0, %v793
  %795 = vdwg.mxu0
  %796 = vmatpush.msra.mxu0 0.0
  %797 = vmatpush.msra.mxu0 0.0
  %798 = vmatpush.msra.mxu0 0.0
  %799 = vmatpush.msra.mxu0 0.0
  %800 = vmatpush.msra.mxu0 0.0
  %801 = vmatpush.msra.mxu0 0.0
  %802 = vmatpush.msra.mxu0 0.0
  %803 = vmatpush.msra.mxu0 0.0
  %804 = vmatpush.msra.mxu0 0.0
  %805 = vmatpush.msra.mxu0 0.0
  %806 = vmatpush.msra.mxu0 0.0
  %807 = vmatpush.msra.mxu0 0.0
  %808 = vmatpush.msra.mxu0 0.0
  %809 = vmatpush.msra.mxu0 0.0
  %810 = vmatpush.msra.mxu0 %v734
  %811 = vmatpush.msra.mxu0 %v732
  %812 = vmatmul.f32.gmra.mxu0 %v774
  %v813 = vpop.f32.mrf.mxu0
  %v814 = vadd.f32 %v794, %v813
  %815 = vdwg.mxu0
  %816 = vmatpush.msra.mxu0 %v731
  %817 = vmatpush.msra.mxu0 %v729
  %818 = vmatpush.msra.mxu0 %v727
  %819 = vmatpush.msra.mxu0 %v725
  %820 = vmatpush.msra.mxu0 %v723
  %821 = vmatpush.msra.mxu0 %v721
  %822 = vmatpush.msra.mxu0 %v719
  %823 = vmatpush.msra.mxu0 %v717
  %824 = vmatpush.msra.mxu0 %v715
  %825 = vmatpush.msra.mxu0 %v713
  %826 = vmatpush.msra.mxu0 %v711
  %827 = vmatpush.msra.mxu0 %v709
  %828 = vmatpush.msra.mxu0 %v707
  %829 = vmatpush.msra.mxu0 %v705
  %830 = vmatpush.msra.mxu0 %v703
  %831 = vmatpush.msra.mxu0 %v701
  %832 = vmatmul.f32.gmra.mxu0 %v756
  %v833 = vpop.f32.mrf.mxu0
  %v834 = vadd.f32 0.0, %v833
  %835 = vdwg.mxu0
  %836 = vmatpush.msra.mxu0 0.0
  %837 = vmatpush.msra.mxu0 0.0
  %838 = vmatpush.msra.mxu0 0.0
  %839 = vmatpush.msra.mxu0 0.0
  %840 = vmatpush.msra.mxu0 0.0
  %841 = vmatpush.msra.mxu0 0.0
  %842 = vmatpush.msra.mxu0 0.0
  %843 = vmatpush.msra.mxu0 0.0
  %844 = vmatpush.msra.mxu0 0.0
  %845 = vmatpush.msra.mxu0 0.0
  %846 = vmatpush.msra.mxu0 0.0
  %847 = vmatpush.msra.mxu0 0.0
  %848 = vmatpush.msra.mxu0 0.0
  %849 = vmatpush.msra.mxu0 0.0
  %850 = vmatpush.msra.mxu0 %v735
  %851 = vmatpush.msra.mxu0 %v733
  %852 = vmatmul.f32.gmra.mxu0 %v774
  %v853 = vpop.f32.mrf.mxu0
  %v854 = vadd.f32 %v834, %v853
  %855 = vdwg.mxu0
  %v856 = vmul.f32 %v814, 0.001953125
  %v857 = vmul.f32 %v854, 0.001953125
  %v858 = vperm.slane %v856, 0
  %v859 = vperm.slane %v857, 0
  %v860 = vsub.f32 %v640, %v858
  %v861 = vsub.f32 %v641, %v859
  %v862 = vsub.f32 %v643, %v858
  %v863 = vsub.f32 %v644, %v859
  %v864 = vsub.f32 %v646, %v858
  %v865 = vsub.f32 %v647, %v859
  %v866 = vsub.f32 %v649, %v858
  %v867 = vsub.f32 %v650, %v859
  %v868 = vsub.f32 %v652, %v858
  %v869 = vsub.f32 %v653, %v859
  %v870 = vmul.f32 %v860, %v690
  %v871 = vmul.f32 %v861, %v691
  %v872 = vmul.f32 %v862, %v692
  %v873 = vmul.f32 %v863, %v693
  %v874 = vmul.f32 %v864, %v694
  %v875 = vmul.f32 %v865, %v695
  %v876 = vmul.f32 %v866, %v696
  %v877 = vmul.f32 %v867, %v697
  %v878 = vmul.f32 %v868, %v698
  %v879 = vmul.f32 %v869, %v699
  %v880 = vmul.f32 %v870, %v870
  %v881 = vmul.f32 %v871, %v871
  %v882 = vmul.f32 %v872, %v872
  %v883 = vmul.f32 %v873, %v873
  %v884 = vmul.f32 %v874, %v874
  %v885 = vmul.f32 %v875, %v875
  %v886 = vmul.f32 %v876, %v876
  %v887 = vmul.f32 %v877, %v877
  %v888 = vmul.f32 %v878, %v878
  %v889 = vmul.f32 %v879, %v879
  %v890 = vadd.f32 %v880, %v882
  %v891 = vadd.f32 %v890, %v884
  %v892 = vadd.f32 %v891, %v886
  %v893 = vsel %vm215, %v888, 0.0
  %v894 = vadd.f32 %v892, %v893
  %v895 = vrot.slane %v894, 4
  %v896 = vadd.f32 %v894, %v895
  %v897 = vrot.slane %v896, 2
  %v898 = vadd.f32 %v896, %v897
  %v899 = vrot.slane %v898, 1
  %v900 = vadd.f32 %v898, %v899
  %v901 = vsel %vm44, %v881, 0.0
  %v902 = vsel %vm44, %v883, 0.0
  %v903 = vadd.f32 %v901, %v902
  %v904 = vsel %vm44, %v885, 0.0
  %v905 = vadd.f32 %v903, %v904
  %v906 = vsel %vm44, %v887, 0.0
  %v907 = vadd.f32 %v905, %v906
  %v908 = vsel %vm764, %v889, 0.0
  %v909 = vadd.f32 %v907, %v908
  %v910 = vrot.slane %v909, 4
  %v911 = vadd.f32 %v909, %v910
  %v912 = vrot.slane %v911, 2
  %v913 = vadd.f32 %v911, %v912
  %v914 = vrot.slane %v913, 1
  %v915 = vadd.f32 %v913, %v914
  %v917 = vsel %vm44, %v915, 0
  %919 = vmatpush.msra.mxu0 %v730
  %920 = vmatpush.msra.mxu0 %v728
  %921 = vmatpush.msra.mxu0 %v726
  %922 = vmatpush.msra.mxu0 %v724
  %923 = vmatpush.msra.mxu0 %v722
  %924 = vmatpush.msra.mxu0 %v720
  %925 = vmatpush.msra.mxu0 %v718
  %926 = vmatpush.msra.mxu0 %v716
  %927 = vmatpush.msra.mxu0 %v714
  %928 = vmatpush.msra.mxu0 %v712
  %929 = vmatpush.msra.mxu0 %v710
  %930 = vmatpush.msra.mxu0 %v708
  %931 = vmatpush.msra.mxu0 %v706
  %932 = vmatpush.msra.mxu0 %v704
  %933 = vmatpush.msra.mxu0 %v702
  %934 = vmatpush.msra.mxu0 %v700
  %935 = vmatmul.f32.gmra.mxu0 %v900
  %v936 = vpop.f32.mrf.mxu0
  %v937 = vadd.f32 0.0, %v936
  %938 = vdwg.mxu0
  %939 = vmatpush.msra.mxu0 0.0
  %940 = vmatpush.msra.mxu0 0.0
  %941 = vmatpush.msra.mxu0 0.0
  %942 = vmatpush.msra.mxu0 0.0
  %943 = vmatpush.msra.mxu0 0.0
  %944 = vmatpush.msra.mxu0 0.0
  %945 = vmatpush.msra.mxu0 0.0
  %946 = vmatpush.msra.mxu0 0.0
  %947 = vmatpush.msra.mxu0 0.0
  %948 = vmatpush.msra.mxu0 0.0
  %949 = vmatpush.msra.mxu0 0.0
  %950 = vmatpush.msra.mxu0 0.0
  %951 = vmatpush.msra.mxu0 0.0
  %952 = vmatpush.msra.mxu0 0.0
  %953 = vmatpush.msra.mxu0 %v734
  %954 = vmatpush.msra.mxu0 %v732
  %955 = vmatmul.f32.gmra.mxu0 %v917
  %v956 = vpop.f32.mrf.mxu0
  %v957 = vadd.f32 %v937, %v956
  %958 = vdwg.mxu0
  %959 = vmatpush.msra.mxu0 %v731
  %960 = vmatpush.msra.mxu0 %v729
  %961 = vmatpush.msra.mxu0 %v727
  %962 = vmatpush.msra.mxu0 %v725
  %963 = vmatpush.msra.mxu0 %v723
  %964 = vmatpush.msra.mxu0 %v721
  %965 = vmatpush.msra.mxu0 %v719
  %966 = vmatpush.msra.mxu0 %v717
  %967 = vmatpush.msra.mxu0 %v715
  %968 = vmatpush.msra.mxu0 %v713
  %969 = vmatpush.msra.mxu0 %v711
  %970 = vmatpush.msra.mxu0 %v709
  %971 = vmatpush.msra.mxu0 %v707
  %972 = vmatpush.msra.mxu0 %v705
  %973 = vmatpush.msra.mxu0 %v703
  %974 = vmatpush.msra.mxu0 %v701
  %975 = vmatmul.f32.gmra.mxu0 %v900
  %v976 = vpop.f32.mrf.mxu0
  %v977 = vadd.f32 0.0, %v976
  %978 = vdwg.mxu0
  %979 = vmatpush.msra.mxu0 0.0
  %980 = vmatpush.msra.mxu0 0.0
  %981 = vmatpush.msra.mxu0 0.0
  %982 = vmatpush.msra.mxu0 0.0
  %983 = vmatpush.msra.mxu0 0.0
  %984 = vmatpush.msra.mxu0 0.0
  %985 = vmatpush.msra.mxu0 0.0
  %986 = vmatpush.msra.mxu0 0.0
  %987 = vmatpush.msra.mxu0 0.0
  %988 = vmatpush.msra.mxu0 0.0
  %989 = vmatpush.msra.mxu0 0.0
  %990 = vmatpush.msra.mxu0 0.0
  %991 = vmatpush.msra.mxu0 0.0
  %992 = vmatpush.msra.mxu0 0.0
  %993 = vmatpush.msra.mxu0 %v735
  %994 = vmatpush.msra.mxu0 %v733
  %995 = vmatmul.f32.gmra.mxu0 %v917
  %v996 = vpop.f32.mrf.mxu0
  %v997 = vadd.f32 %v977, %v996
  %998 = vdwg.mxu0
  %v999 = vmul.f32 %v957, 0.001953125
  %v1000 = vmul.f32 %v997, 0.001953125
  %v1001 = vld [vmem:[%s4] sm:$0x3]
  %v1002 = vadd.f32 %v999, 1e-05
  %v1003 = vadd.f32 %v1000, 1e-05
  %v1004 = vrsqrt.pop %v1002
  %v1005 = vmul.f32 %v1004, %v1002
  %v1006 = vmul.f32 %v1005, %v1004
  %v1007 = vmul.f32 0.5, %v1006
  %v1008 = vsub.f32 1.5, %v1007
  %v1009 = vmul.f32 %v1004, %v1008
  %vm1010 = vweird.f32 %v1002
  %vm1011 = vweird.f32 %v1004
  %vm1012 = vmor %vm1010, %vm1011
  %v1013 = vsel %vm1012, %v1004, %v1009
  %v1014 = vrsqrt.pop %v1003
  %v1015 = vmul.f32 %v1014, %v1003
  %v1016 = vmul.f32 %v1015, %v1014
  %v1017 = vmul.f32 0.5, %v1016
  %v1018 = vsub.f32 1.5, %v1017
  %v1019 = vmul.f32 %v1014, %v1018
  %vm1020 = vweird.f32 %v1003
  %vm1021 = vweird.f32 %v1014
  %vm1022 = vmor %vm1020, %vm1021
  %v1023 = vsel %vm1022, %v1014, %v1019
  %v1026 = vrot.slane %v1023, 7
  %vm1027 = vcmask 1040384
  %v1028 = vsel %vm1027, %v1013, %v1026
  %v1030 = vmul.f32 %v1001, %v1028
  %v1032 = vperm.slane %v1030, 0
  %v1033 = vperm.slane %v1030, 1
  %v1036 = vmul.f32 %v870, %v1032
  %v1037 = vmul.f32 %v871, %v1033
  %v1038 = vmul.f32 %v872, %v1032
  %v1039 = vmul.f32 %v873, %v1033
  %v1040 = vmul.f32 %v874, %v1032
  %v1041 = vmul.f32 %v875, %v1033
  %v1042 = vmul.f32 %v876, %v1032
  %v1043 = vmul.f32 %v877, %v1033
  %v1044 = vmul.f32 %v878, %v1032
  %v1045 = vmul.f32 %v879, %v1033
  %v1046 = vld [vmem:[%s5] sm:$0x3]
  %v1048 = vperm.slane %v1046, 0
  %v1049 = vperm.slane %v1046, 1
  %v1052 = vadd.f32 %v1036, %v1048
  %v1053 = vadd.f32 %v1037, %v1049
  %v1054 = vadd.f32 %v1038, %v1048
  %v1055 = vadd.f32 %v1039, %v1049
  %v1056 = vadd.f32 %v1040, %v1048
  %v1057 = vadd.f32 %v1041, %v1049
  %v1058 = vadd.f32 %v1042, %v1048
  %v1059 = vadd.f32 %v1043, %v1049
  %v1060 = vadd.f32 %v1044, %v1048
  %v1061 = vadd.f32 %v1045, %v1049
  %v1062 = vmax.f32 %v1052, 0.0
  %v1063 = vmax.f32 %v1053, 0.0
  %v1064 = vmax.f32 %v1054, 0.0
  %v1065 = vmax.f32 %v1055, 0.0
  %v1066 = vmax.f32 %v1056, 0.0
  %v1067 = vmax.f32 %v1057, 0.0
  %v1068 = vmax.f32 %v1058, 0.0
  %v1069 = vmax.f32 %v1059, 0.0
  %v1070 = vmax.f32 %v1060, 0.0
  %v1071 = vmax.f32 %v1061, 0.0
  %v1072 = vmul.f32 %v1062, %v690
  %v1073 = vmul.f32 %v1063, %v691
  %v1074 = vmul.f32 %v1064, %v692
  %v1075 = vmul.f32 %v1065, %v693
  %v1076 = vmul.f32 %v1066, %v694
  %v1077 = vmul.f32 %v1067, %v695
  %v1078 = vmul.f32 %v1068, %v696
  %v1079 = vmul.f32 %v1069, %v697
  %v1080 = vmul.f32 %v1070, %v698
  %v1081 = vmul.f32 %v1071, %v699
  %v1092 = vrot.slane %v1072, 7
  %v1093 = vrot.slane %v1073, 7
  %v1094 = vrot.slane %v1074, 7
  %v1095 = vsel %vm1027, %v1092, %v1094
  %v1096 = vrot.slane %v1075, 7
  %v1097 = vsel %vm1027, %v1093, %v1096
  %v1098 = vrot.slane %v1076, 7
  %v1099 = vsel %vm1027, %v1094, %v1098
  %v1100 = vrot.slane %v1077, 7
  %v1101 = vsel %vm1027, %v1096, %v1100
  %v1102 = vrot.slane %v1078, 7
  %v1103 = vsel %vm1027, %v1098, %v1102
  %v1104 = vrot.slane %v1079, 7
  %v1105 = vsel %vm1027, %v1100, %v1104
  %v1106 = vrot.slane %v1080, 7
  %v1107 = vsel %vm1027, %v1102, %v1106
  %v1108 = vrot.slane %v1081, 7
  %v1109 = vsel %vm1027, %v1104, %v1108
  %1120 = vst [vmem:[#allocation3] sm:$0xfe] %v1092
  %vm1121 = vcmask 130049
  %1122 = vst.msk [vmem:[#allocation3 + $0x8] sm:$0xfe] %vm1121, %v1093
  %1123 = vst [vmem:[#allocation3 + $0x10] sm:$0xff] %v1095
  %1124 = vst.msk [vmem:[#allocation3 + $0x18] sm:$0xff] %vm44, %v1097
  %1125 = vst [vmem:[#allocation3 + $0x20] sm:$0xff] %v1099
  %1126 = vst.msk [vmem:[#allocation3 + $0x28] sm:$0xff] %vm44, %v1101
  %1127 = vst [vmem:[#allocation3 + $0x30] sm:$0xff] %v1103
  %1128 = vst.msk [vmem:[#allocation3 + $0x38] sm:$0xff] %vm44, %v1105
  %1129 = vst [vmem:[#allocation3 + $0x40] sm:$0x1f] %v1107
  %vm1130 = vcmask 126976
  %1131 = vst.msk [vmem:[#allocation3 + $0x48] sm:$0x1f] %vm1130, %v1109
  %v1132 = vld [vmem:[#allocation3] sm:$0xff]
  %v1133 = vld [vmem:[#allocation3 + $0x8] sm:$0xff]
  %v1134 = vld [vmem:[#allocation3 + $0x10] sm:$0xff]
  %v1135 = vld [vmem:[#allocation3 + $0x18] sm:$0xff]
  %v1136 = vld [vmem:[#allocation3 + $0x20] sm:$0xff]
  %v1137 = vld [vmem:[#allocation3 + $0x28] sm:$0xff]
  %v1138 = vld [vmem:[#allocation3 + $0x30] sm:$0xff]
  %v1139 = vld [vmem:[#allocation3 + $0x38] sm:$0xff]
  %v1140 = vld [vmem:[#allocation3 + $0x40] sm:$0xf]
  %v1141 = vld [vmem:[#allocation3 + $0x48] sm:$0xf]
  %v1142 = vpack.c.bf16 %v1134, %v1132
  %v1143 = vpack.c.bf16 %v1135, %v1133
  %v1144 = vpack.c.bf16 %v1138, %v1136
  %v1145 = vpack.c.bf16 %v1139, %v1137
  %v1146 = vpack.c.bf16 %v1140, %v1140
  %v1147 = vpack.c.bf16 %v1141, %v1141
  %v1148 = vld [vmem:[%s2] sm:$0xf]
  %v1149 = vld [vmem:[%s2 + $0x4] sm:$0xf]
  %v1150 = vld [vmem:[%s2 + $0x8] sm:$0xf]
  %v1151 = vld [vmem:[%s2 + $0xc] sm:$0xf]
  %v1152 = vld [vmem:[%s2 + $0x10] sm:$0xf]
  %v1153 = vld [vmem:[%s2 + $0x14] sm:$0xf]
  %v1154 = vld [vmem:[%s2 + $0x18] sm:$0xf]
  %v1155 = vld [vmem:[%s2 + $0x1c] sm:$0xf]
  %v1156 = vld [vmem:[%s2 + $0x20] sm:$0xf]
  %v1157 = vld [vmem:[%s2 + $0x24] sm:$0xf]
  %v1158 = vld [vmem:[%s2 + $0x28] sm:$0xf]
  %v1159 = vld [vmem:[%s2 + $0x2c] sm:$0xf]
  %v1160 = vld [vmem:[%s2 + $0x30] sm:$0xf]
  %v1161 = vld [vmem:[%s2 + $0x34] sm:$0xf]
  %v1162 = vld [vmem:[%s2 + $0x38] sm:$0xf]
  %v1163 = vld [vmem:[%s2 + $0x3c] sm:$0xf]
  %v1164 = vld [vmem:[%s2 + $0x40] sm:$0xf]
  %v1165 = vld [vmem:[%s2 + $0x44] sm:$0xf]
  %v1166 = vld [vmem:[#allocation3] sm:$0xfe]
  %v1167 = vld [vmem:[#allocation3 + $0x8] sm:$0xfe]
  %v1168 = vld [vmem:[#allocation3 + $0x40] sm:$0x1f]
  %v1169 = vld [vmem:[#allocation3 + $0x48] sm:$0x1f]
  %v1170 = vpack.c.bf16 %v1134, %v1166
  %v1171 = vpack.c.bf16 %v1135, %v1167
  %v1172 = vpack.c.bf16 %v1168, %v1168
  %v1173 = vpack.c.bf16 %v1169, %v1169
  %s1174 = scalar_lea.vmem %s2, 72
  %v1175 = vld [vmem:[%s1174] sm:$0xf]
  %v1176 = vld [vmem:[%s1174 + $0x4] sm:$0xf]
  %v1177 = vld [vmem:[%s1174 + $0x8] sm:$0xf]
  %v1178 = vld [vmem:[%s1174 + $0xc] sm:$0xf]
  %v1179 = vld [vmem:[%s1174 + $0x10] sm:$0xf]
  %v1180 = vld [vmem:[%s1174 + $0x14] sm:$0xf]
  %v1181 = vld [vmem:[%s1174 + $0x18] sm:$0xf]
  %v1182 = vld [vmem:[%s1174 + $0x1c] sm:$0xf]
  %v1183 = vld [vmem:[%s1174 + $0x20] sm:$0xf]
  %v1184 = vld [vmem:[%s1174 + $0x24] sm:$0xf]
  %v1185 = vld [vmem:[%s1174 + $0x28] sm:$0xf]
  %v1186 = vld [vmem:[%s1174 + $0x2c] sm:$0xf]
  %v1187 = vld [vmem:[%s1174 + $0x30] sm:$0xf]
  %v1188 = vld [vmem:[%s1174 + $0x34] sm:$0xf]
  %v1189 = vld [vmem:[%s1174 + $0x38] sm:$0xf]
  %v1190 = vld [vmem:[%s1174 + $0x3c] sm:$0xf]
  %v1191 = vld [vmem:[%s1174 + $0x40] sm:$0xf]
  %v1192 = vld [vmem:[%s1174 + $0x44] sm:$0xf]
  %vm1193 = vsmask.f32 7424
  %v1195 = vshrl.u32 %v1170, 16
  %v1197 = vshll.u32 %v1170, 16
  %v1199 = vrot.slane %v1197, 1
  %v1200 = vor.u32 %v1195, %v1199
  %v1202 = vshll.u32 %v1144, 16
  %v1204 = vrot.slane %v1202, 1
  %v1205 = vsel %vm1193, %v1200, %v1204
  %v1207 = vshrl.u32 %v1171, 16
  %v1209 = vshll.u32 %v1171, 16
  %v1211 = vrot.slane %v1209, 1
  %v1212 = vor.u32 %v1207, %v1211
  %v1214 = vshll.u32 %v1145, 16
  %v1216 = vrot.slane %v1214, 1
  %v1217 = vsel %vm1193, %v1212, %v1216
  %v1218 = vshrl.u32 %v1144, 16
  %v1220 = vor.u32 %v1218, %v1204
  %v1222 = vshll.u32 %v1172, 16
  %v1224 = vrot.slane %v1222, 1
  %v1225 = vsel %vm1193, %v1220, %v1224
  %v1226 = vshrl.u32 %v1145, 16
  %v1228 = vor.u32 %v1226, %v1216
  %v1230 = vshll.u32 %v1173, 16
  %v1232 = vrot.slane %v1230, 1
  %v1233 = vsel %vm1193, %v1228, %v1232
  %v1234 = vshrl.u32 %v1172, 16
  %v1236 = vor.u32 %v1234, %v1224
  %v1237 = vshrl.u32 %v1173, 16
  %v1239 = vor.u32 %v1237, %v1232
  %v1261 = vunpack.c.l.b16 %v1175
  %v1262 = vunpack.c.l.b16 %v1176
  %v1263 = vunpack.c.l.b16 %v1177
  %v1264 = vunpack.c.l.b16 %v1178
  %v1265 = vunpack.c.l.b16 %v1179
  %v1266 = vunpack.c.l.b16 %v1180
  %v1267 = vunpack.c.l.b16 %v1181
  %v1268 = vunpack.c.l.b16 %v1182
  %v1269 = vunpack.c.l.b16 %v1183
  %v1270 = vunpack.c.l.b16 %v1184
  %v1271 = vunpack.c.l.b16 %v1185
  %v1272 = vunpack.c.l.b16 %v1186
  %v1273 = vunpack.c.l.b16 %v1187
  %v1274 = vunpack.c.l.b16 %v1188
  %v1275 = vunpack.c.l.b16 %v1189
  %v1276 = vunpack.c.l.b16 %v1190
  %v1277 = vunpack.c.l.b16 %v1191
  %v1278 = vunpack.c.l.b16 %v1192
  %v1279 = vpack.c.b16 %v1262, %v1261
  %v1280 = vpack.c.b16 %v1264, %v1263
  %v1281 = vpack.c.b16 %v1266, %v1265
  %v1282 = vpack.c.b16 %v1268, %v1267
  %v1283 = vpack.c.b16 %v1270, %v1269
  %v1284 = vpack.c.b16 %v1272, %v1271
  %v1285 = vpack.c.b16 %v1274, %v1273
  %v1286 = vpack.c.b16 %v1276, %v1275
  %v1287 = vpack.c.b16 %v1278, %v1277
  %v1298 = vsel %vm44, %v1217, 0
  %v1301 = vsel %vm44, %v1233, 0
  %v1304 = vsel %vm44, %v1239, 0
  %1306 = vmatpush.bf16.msra.mxu0 %v1286
  %1307 = vmatpush.bf16.msra.mxu0 %v1285
  %1308 = vmatpush.bf16.msra.mxu0 %v1284
  %1309 = vmatpush.bf16.msra.mxu0 %v1283
  %1310 = vmatpush.bf16.msra.mxu0 %v1282
  %1311 = vmatpush.bf16.msra.mxu0 %v1281
  %1312 = vmatpush.bf16.msra.mxu0 %v1280
  %1313 = vmatpush.bf16.msra.mxu0 %v1279
  %1314 = vmatmul.bf16.gmra.mxu0 %v1205
  %v1315 = vpop.f32.mrf.mxu0
  %v1316 = vadd.f32 0.0, %v1315
  %v1317 = vpop.f32.mrf.mxu0
  %v1318 = vadd.f32 0.0, %v1317
  %1319 = vmatmul.bf16.gmra.mxu0 %v1225
  %v1320 = vpop.f32.mrf.mxu0
  %v1321 = vadd.f32 0.0, %v1320
  %v1322 = vpop.f32.mrf.mxu0
  %v1323 = vadd.f32 0.0, %v1322
  %1324 = vmatmul.bf16.gmra.mxu0 %v1236
  %v1325 = vpop.f32.mrf.mxu0
  %v1326 = vadd.f32 0.0, %v1325
  %v1327 = vpop.f32.mrf.mxu0
  %1328 = vdwg.mxu0
  %1329 = vmatpush.bf16.msra.mxu0 0
  %1330 = vmatpush.bf16.msra.mxu0 0
  %1331 = vmatpush.bf16.msra.mxu0 0
  %1332 = vmatpush.bf16.msra.mxu0 0
  %1333 = vmatpush.bf16.msra.mxu0 0
  %1334 = vmatpush.bf16.msra.mxu0 0
  %1335 = vmatpush.bf16.msra.mxu0 0
  %1336 = vmatpush.bf16.msra.mxu0 %v1287
  %1337 = vmatmul.bf16.gmra.mxu0 %v1298
  %v1338 = vpop.f32.mrf.mxu0
  %v1339 = vadd.f32 %v1316, %v1338
  %v1340 = vpop.f32.mrf.mxu0
  %v1341 = vadd.f32 %v1318, %v1340
  %1342 = vmatmul.bf16.gmra.mxu0 %v1301
  %v1343 = vpop.f32.mrf.mxu0
  %v1344 = vadd.f32 %v1321, %v1343
  %v1345 = vpop.f32.mrf.mxu0
  %v1346 = vadd.f32 %v1323, %v1345
  %1347 = vmatmul.bf16.gmra.mxu0 %v1304
  %v1348 = vpop.f32.mrf.mxu0
  %v1349 = vadd.f32 %v1326, %v1348
  %v1350 = vpop.f32.mrf.mxu0
  %1351 = vdwg.mxu0
  %v1370 = vunpack.c.l.b16 %v1148
  %v1371 = vunpack.c.l.b16 %v1149
  %v1372 = vunpack.c.l.b16 %v1150
  %v1373 = vunpack.c.l.b16 %v1151
  %v1374 = vunpack.c.l.b16 %v1152
  %v1375 = vunpack.c.l.b16 %v1153
  %v1376 = vunpack.c.l.b16 %v1154
  %v1377 = vunpack.c.l.b16 %v1155
  %v1378 = vunpack.c.l.b16 %v1156
  %v1379 = vunpack.c.l.b16 %v1157
  %v1380 = vunpack.c.l.b16 %v1158
  %v1381 = vunpack.c.l.b16 %v1159
  %v1382 = vunpack.c.l.b16 %v1160
  %v1383 = vunpack.c.l.b16 %v1161
  %v1384 = vunpack.c.l.b16 %v1162
  %v1385 = vunpack.c.l.b16 %v1163
  %v1386 = vunpack.c.l.b16 %v1164
  %v1387 = vunpack.c.l.b16 %v1165
  %v1388 = vpack.c.b16 %v1371, %v1370
  %v1389 = vpack.c.b16 %v1373, %v1372
  %v1390 = vpack.c.b16 %v1375, %v1374
  %v1391 = vpack.c.b16 %v1377, %v1376
  %v1392 = vpack.c.b16 %v1379, %v1378
  %v1393 = vpack.c.b16 %v1381, %v1380
  %v1394 = vpack.c.b16 %v1383, %v1382
  %v1395 = vpack.c.b16 %v1385, %v1384
  %v1396 = vpack.c.b16 %v1387, %v1386
  %v1407 = vsel %vm44, %v1143, 0
  %v1409 = vsel %vm44, %v1145, 0
  %v1412 = vsel %vm44, %v1147, 0
  %1414 = vmatpush.bf16.msra.mxu0 %v1395
  %1415 = vmatpush.bf16.msra.mxu0 %v1394
  %1416 = vmatpush.bf16.msra.mxu0 %v1393
  %1417 = vmatpush.bf16.msra.mxu0 %v1392
  %1418 = vmatpush.bf16.msra.mxu0 %v1391
  %1419 = vmatpush.bf16.msra.mxu0 %v1390
  %1420 = vmatpush.bf16.msra.mxu0 %v1389
  %1421 = vmatpush.bf16.msra.mxu0 %v1388
  %1422 = vmatmul.bf16.gmra.mxu0 %v1142
  %v1423 = vpop.f32.mrf.mxu0
  %v1424 = vadd.f32 %v1339, %v1423
  %v1425 = vpop.f32.mrf.mxu0
  %v1426 = vadd.f32 %v1341, %v1425
  %1427 = vmatmul.bf16.gmra.mxu0 %v1144
  %v1428 = vpop.f32.mrf.mxu0
  %v1429 = vadd.f32 %v1344, %v1428
  %v1430 = vpop.f32.mrf.mxu0
  %v1431 = vadd.f32 %v1346, %v1430
  %1432 = vmatmul.bf16.gmra.mxu0 %v1146
  %v1433 = vpop.f32.mrf.mxu0
  %v1434 = vadd.f32 %v1349, %v1433
  %v1435 = vpop.f32.mrf.mxu0
  %1436 = vdwg.mxu0
  %1437 = vmatpush.bf16.msra.mxu0 0
  %1438 = vmatpush.bf16.msra.mxu0 0
  %1439 = vmatpush.bf16.msra.mxu0 0
  %1440 = vmatpush.bf16.msra.mxu0 0
  %1441 = vmatpush.bf16.msra.mxu0 0
  %1442 = vmatpush.bf16.msra.mxu0 0
  %1443 = vmatpush.bf16.msra.mxu0 0
  %1444 = vmatpush.bf16.msra.mxu0 %v1396
  %1445 = vmatmul.bf16.gmra.mxu0 %v1407
  %v1446 = vpop.f32.mrf.mxu0
  %v1447 = vadd.f32 %v1424, %v1446
  %v1448 = vpop.f32.mrf.mxu0
  %v1449 = vadd.f32 %v1426, %v1448
  %1450 = vmatmul.bf16.gmra.mxu0 %v1409
  %v1451 = vpop.f32.mrf.mxu0
  %v1452 = vadd.f32 %v1429, %v1451
  %v1453 = vpop.f32.mrf.mxu0
  %v1454 = vadd.f32 %v1431, %v1453
  %1455 = vmatmul.bf16.gmra.mxu0 %v1412
  %v1456 = vpop.f32.mrf.mxu0
  %v1457 = vadd.f32 %v1434, %v1456
  %v1458 = vpop.f32.mrf.mxu0
  %1459 = vdwg.mxu0
  %v1460 = vld [vmem:[#allocation3] sm:$0xfc]
  %v1461 = vld [vmem:[#allocation3 + $0x8] sm:$0xfc]
  %v1462 = vld [vmem:[#allocation3 + $0x40] sm:$0x3f]
  %v1463 = vld [vmem:[#allocation3 + $0x48] sm:$0x3f]
  %v1464 = vpack.c.bf16 %v1134, %v1460
  %v1465 = vpack.c.bf16 %v1135, %v1461
  %v1466 = vpack.c.bf16 %v1462, %v1462
  %v1467 = vpack.c.bf16 %v1463, %v1463
  %s1468 = scalar_lea.vmem %s2, 144
  %v1469 = vld [vmem:[%s1468] sm:$0xf]
  %v1470 = vld [vmem:[%s1468 + $0x4] sm:$0xf]
  %v1471 = vld [vmem:[%s1468 + $0x8] sm:$0xf]
  %v1472 = vld [vmem:[%s1468 + $0xc] sm:$0xf]
  %v1473 = vld [vmem:[%s1468 + $0x10] sm:$0xf]
  %v1474 = vld [vmem:[%s1468 + $0x14] sm:$0xf]
  %v1475 = vld [vmem:[%s1468 + $0x18] sm:$0xf]
  %v1476 = vld [vmem:[%s1468 + $0x1c] sm:$0xf]
  %v1477 = vld [vmem:[%s1468 + $0x20] sm:$0xf]
  %v1478 = vld [vmem:[%s1468 + $0x24] sm:$0xf]
  %v1479 = vld [vmem:[%s1468 + $0x28] sm:$0xf]
  %v1480 = vld [vmem:[%s1468 + $0x2c] sm:$0xf]
  %v1481 = vld [vmem:[%s1468 + $0x30] sm:$0xf]
  %v1482 = vld [vmem:[%s1468 + $0x34] sm:$0xf]
  %v1483 = vld [vmem:[%s1468 + $0x38] sm:$0xf]
  %v1484 = vld [vmem:[%s1468 + $0x3c] sm:$0xf]
  %v1485 = vld [vmem:[%s1468 + $0x40] sm:$0xf]
  %v1486 = vld [vmem:[%s1468 + $0x44] sm:$0xf]
  %vm1493 = vcmask 1046528
  %v1494 = vrot.slane %v1464, 1
  %v1495 = vrot.slane %v1144, 1
  %v1496 = vsel %vm1493, %v1494, %v1495
  %v1497 = vrot.slane %v1465, 1
  %v1498 = vrot.slane %v1145, 1
  %v1499 = vsel %vm1493, %v1497, %v1498
  %v1500 = vrot.slane %v1466, 1
  %v1501 = vsel %vm1493, %v1495, %v1500
  %v1502 = vrot.slane %v1467, 1
  %v1503 = vsel %vm1493, %v1498, %v1502
  %v1525 = vunpack.c.l.b16 %v1469
  %v1526 = vunpack.c.l.b16 %v1470
  %v1527 = vunpack.c.l.b16 %v1471
  %v1528 = vunpack.c.l.b16 %v1472
  %v1529 = vunpack.c.l.b16 %v1473
  %v1530 = vunpack.c.l.b16 %v1474
  %v1531 = vunpack.c.l.b16 %v1475
  %v1532 = vunpack.c.l.b16 %v1476
  %v1533 = vunpack.c.l.b16 %v1477
  %v1534 = vunpack.c.l.b16 %v1478
  %v1535 = vunpack.c.l.b16 %v1479
  %v1536 = vunpack.c.l.b16 %v1480
  %v1537 = vunpack.c.l.b16 %v1481
  %v1538 = vunpack.c.l.b16 %v1482
  %v1539 = vunpack.c.l.b16 %v1483
  %v1540 = vunpack.c.l.b16 %v1484
  %v1541 = vunpack.c.l.b16 %v1485
  %v1542 = vunpack.c.l.b16 %v1486
  %v1543 = vpack.c.b16 %v1526, %v1525
  %v1544 = vpack.c.b16 %v1528, %v1527
  %v1545 = vpack.c.b16 %v1530, %v1529
  %v1546 = vpack.c.b16 %v1532, %v1531
  %v1547 = vpack.c.b16 %v1534, %v1533
  %v1548 = vpack.c.b16 %v1536, %v1535
  %v1549 = vpack.c.b16 %v1538, %v1537
  %v1550 = vpack.c.b16 %v1540, %v1539
  %v1551 = vpack.c.b16 %v1542, %v1541
  %v1562 = vsel %vm44, %v1499, 0
  %v1565 = vsel %vm44, %v1503, 0
  %v1568 = vsel %vm44, %v1502, 0
  %1570 = vmatpush.bf16.msra.mxu0 %v1550
  %1571 = vmatpush.bf16.msra.mxu0 %v1549
  %1572 = vmatpush.bf16.msra.mxu0 %v1548
  %1573 = vmatpush.bf16.msra.mxu0 %v1547
  %1574 = vmatpush.bf16.msra.mxu0 %v1546
  %1575 = vmatpush.bf16.msra.mxu0 %v1545
  %1576 = vmatpush.bf16.msra.mxu0 %v1544
  %1577 = vmatpush.bf16.msra.mxu0 %v1543
  %1578 = vmatmul.bf16.gmra.mxu0 %v1496
  %v1579 = vpop.f32.mrf.mxu0
  %v1580 = vadd.f32 0.0, %v1579
  %v1581 = vpop.f32.mrf.mxu0
  %v1582 = vadd.f32 0.0, %v1581
  %1583 = vmatmul.bf16.gmra.mxu0 %v1501
  %v1584 = vpop.f32.mrf.mxu0
  %v1585 = vadd.f32 0.0, %v1584
  %v1586 = vpop.f32.mrf.mxu0
  %v1587 = vadd.f32 0.0, %v1586
  %1588 = vmatmul.bf16.gmra.mxu0 %v1500
  %v1589 = vpop.f32.mrf.mxu0
  %v1590 = vadd.f32 0.0, %v1589
  %v1591 = vpop.f32.mrf.mxu0
  %1592 = vdwg.mxu0
  %1593 = vmatpush.bf16.msra.mxu0 0
  %1594 = vmatpush.bf16.msra.mxu0 0
  %1595 = vmatpush.bf16.msra.mxu0 0
  %1596 = vmatpush.bf16.msra.mxu0 0
  %1597 = vmatpush.bf16.msra.mxu0 0
  %1598 = vmatpush.bf16.msra.mxu0 0
  %1599 = vmatpush.bf16.msra.mxu0 0
  %1600 = vmatpush.bf16.msra.mxu0 %v1551
  %1601 = vmatmul.bf16.gmra.mxu0 %v1562
  %v1602 = vpop.f32.mrf.mxu0
  %v1603 = vadd.f32 %v1580, %v1602
  %v1604 = vpop.f32.mrf.mxu0
  %v1605 = vadd.f32 %v1582, %v1604
  %1606 = vmatmul.bf16.gmra.mxu0 %v1565
  %v1607 = vpop.f32.mrf.mxu0
  %v1608 = vadd.f32 %v1585, %v1607
  %v1609 = vpop.f32.mrf.mxu0
  %v1610 = vadd.f32 %v1587, %v1609
  %1611 = vmatmul.bf16.gmra.mxu0 %v1568
  %v1612 = vpop.f32.mrf.mxu0
  %v1613 = vadd.f32 %v1590, %v1612
  %v1614 = vpop.f32.mrf.mxu0
  %1615 = vdwg.mxu0
  %v1616 = vadd.f32 %v1447, %v1603
  %v1617 = vadd.f32 %v1449, %v1605
  %v1618 = vadd.f32 %v1452, %v1608
  %v1619 = vadd.f32 %v1454, %v1610
  %v1620 = vadd.f32 %v1457, %v1613
  %v1621 = vld [vmem:[%s3] sm:$0xff]
  %v1622 = vld [vmem:[%s3 + $0x10] sm:$0xff]
  %v1623 = vld [vmem:[%s3 + $0x20] sm:$0xff]
  %v1624 = vld [vmem:[%s3 + $0x30] sm:$0xff]
  %v1625 = vld [vmem:[%s3 + $0x40] sm:$0xff]
  %v1626 = vld [vmem:[%s3 + $0x50] sm:$0xff]
  %v1627 = vld [vmem:[%s3 + $0x60] sm:$0xff]
  %v1628 = vld [vmem:[%s3 + $0x70] sm:$0xff]
  %v1629 = vld [vmem:[%s3 + $0x80] sm:$0xff]
  %v1630 = vld [vmem:[%s3 + $0x90] sm:$0xff]
  %v1631 = vld [vmem:[%s3 + $0xa0] sm:$0xff]
  %v1632 = vld [vmem:[%s3 + $0xb0] sm:$0xff]
  %v1633 = vld [vmem:[%s3 + $0xc0] sm:$0xff]
  %v1634 = vld [vmem:[%s3 + $0xd0] sm:$0xff]
  %v1635 = vld [vmem:[%s3 + $0xe0] sm:$0xff]
  %v1636 = vld [vmem:[%s3 + $0xf0] sm:$0xff]
  %v1637 = vmul.f32 %v1616, %v663
  %v1638 = vmul.f32 %v1617, %v668
  %v1639 = vmul.f32 %v1618, %v673
  %v1640 = vmul.f32 %v1619, %v678
  %v1641 = vmul.f32 %v1620, %v683
  %v1642 = vadd.f32 %v1637, %v1638
  %v1643 = vadd.f32 %v1642, %v1639
  %v1644 = vadd.f32 %v1643, %v1640
  %v1645 = vsel %vm215, %v1641, 0.0
  %v1646 = vadd.f32 %v1644, %v1645
  %v1647 = vrot.slane %v1646, 4
  %v1648 = vadd.f32 %v1646, %v1647
  %v1649 = vrot.slane %v1648, 2
  %v1650 = vadd.f32 %v1648, %v1649
  %v1651 = vrot.slane %v1650, 1
  %v1652 = vadd.f32 %v1650, %v1651
  %1653 = vmatpush.msra.mxu0 %v1636
  %1654 = vmatpush.msra.mxu0 %v1635
  %1655 = vmatpush.msra.mxu0 %v1634
  %1656 = vmatpush.msra.mxu0 %v1633
  %1657 = vmatpush.msra.mxu0 %v1632
  %1658 = vmatpush.msra.mxu0 %v1631
  %1659 = vmatpush.msra.mxu0 %v1630
  %1660 = vmatpush.msra.mxu0 %v1629
  %1661 = vmatpush.msra.mxu0 %v1628
  %1662 = vmatpush.msra.mxu0 %v1627
  %1663 = vmatpush.msra.mxu0 %v1626
  %1664 = vmatpush.msra.mxu0 %v1625
  %1665 = vmatpush.msra.mxu0 %v1624
  %1666 = vmatpush.msra.mxu0 %v1623
  %1667 = vmatpush.msra.mxu0 %v1622
  %1668 = vmatpush.msra.mxu0 %v1621
  %1669 = vmatmul.f32.gmra.mxu0 %v1652
  %v1670 = vpop.f32.mrf.mxu0
  %v1671 = vadd.f32 0.0, %v1670
  %1672 = vdwg.mxu0
  %v1673 = vmul.f32 %v1671, 0.001953125
  %v1674 = vperm.slane %v1673, 0
  %v1675 = vsub.f32 %v1616, %v1674
  %v1676 = vsub.f32 %v1617, %v1674
  %v1677 = vsub.f32 %v1618, %v1674
  %v1678 = vsub.f32 %v1619, %v1674
  %v1679 = vsub.f32 %v1620, %v1674
  %v1680 = vmul.f32 %v1675, %v663
  %v1681 = vmul.f32 %v1676, %v668
  %v1682 = vmul.f32 %v1677, %v673
  %v1683 = vmul.f32 %v1678, %v678
  %v1684 = vmul.f32 %v1679, %v683
  %v1685 = vmul.f32 %v1680, %v1680
  %v1686 = vmul.f32 %v1681, %v1681
  %v1687 = vmul.f32 %v1682, %v1682
  %v1688 = vmul.f32 %v1683, %v1683
  %v1689 = vmul.f32 %v1684, %v1684
  %v1690 = vadd.f32 %v1685, %v1686
  %v1691 = vadd.f32 %v1690, %v1687
  %v1692 = vadd.f32 %v1691, %v1688
  %v1693 = vsel %vm215, %v1689, 0.0
  %v1694 = vadd.f32 %v1692, %v1693
  %v1695 = vrot.slane %v1694, 4
  %v1696 = vadd.f32 %v1694, %v1695
  %v1697 = vrot.slane %v1696, 2
  %v1698 = vadd.f32 %v1696, %v1697
  %v1699 = vrot.slane %v1698, 1
  %v1700 = vadd.f32 %v1698, %v1699
  %1701 = vmatpush.msra.mxu0 %v1636
  %1702 = vmatpush.msra.mxu0 %v1635
  %1703 = vmatpush.msra.mxu0 %v1634
  %1704 = vmatpush.msra.mxu0 %v1633
  %1705 = vmatpush.msra.mxu0 %v1632
  %1706 = vmatpush.msra.mxu0 %v1631
  %1707 = vmatpush.msra.mxu0 %v1630
  %1708 = vmatpush.msra.mxu0 %v1629
  %1709 = vmatpush.msra.mxu0 %v1628
  %1710 = vmatpush.msra.mxu0 %v1627
  %1711 = vmatpush.msra.mxu0 %v1626
  %1712 = vmatpush.msra.mxu0 %v1625
  %1713 = vmatpush.msra.mxu0 %v1624
  %1714 = vmatpush.msra.mxu0 %v1623
  %1715 = vmatpush.msra.mxu0 %v1622
  %1716 = vmatpush.msra.mxu0 %v1621
  %1717 = vmatmul.f32.gmra.mxu0 %v1700
  %v1718 = vpop.f32.mrf.mxu0
  %v1719 = vadd.f32 0.0, %v1718
  %1720 = vdwg.mxu0
  %v1721 = vmul.f32 %v1719, 0.001953125
  %v1722 = vld [vmem:[%s6] sm:$0x1]
  %v1723 = vadd.f32 %v1721, 1e-05
  %v1724 = vrsqrt.pop %v1723
  %v1725 = vmul.f32 %v1724, %v1723
  %v1726 = vmul.f32 %v1725, %v1724
  %v1727 = vmul.f32 0.5, %v1726
  %v1728 = vsub.f32 1.5, %v1727
  %v1729 = vmul.f32 %v1724, %v1728
  %vm1730 = vweird.f32 %v1723
  %vm1731 = vweird.f32 %v1724
  %vm1732 = vmor %vm1730, %vm1731
  %v1733 = vsel %vm1732, %v1724, %v1729
  %v1734 = vmul.f32 %v1722, %v1733
  %v1736 = vperm.slane %v1734, 0
  %v1738 = vmul.f32 %v1680, %v1736
  %v1739 = vmul.f32 %v1681, %v1736
  %v1740 = vmul.f32 %v1682, %v1736
  %v1741 = vmul.f32 %v1683, %v1736
  %v1742 = vmul.f32 %v1684, %v1736
  %v1743 = vld [vmem:[%s7] sm:$0x1]
  %v1745 = vperm.slane %v1743, 0
  %v1747 = vadd.f32 %v1738, %v1745
  %v1748 = vadd.f32 %v1739, %v1745
  %v1749 = vadd.f32 %v1740, %v1745
  %v1750 = vadd.f32 %v1741, %v1745
  %v1751 = vadd.f32 %v1742, %v1745
  %v1752 = vadd.f32 %v1747, %v639
  %v1753 = vadd.f32 %v1748, %v642
  %v1754 = vmax.f32 %v1752, 0.0
  %v1755 = vmax.f32 %v1753, 0.0
  %1756 = vst [vmem:[%s10] sm:$0xff] %v1754
  %1757 = vst [vmem:[%s10 + $0x8] sm:$0xff] %v1755
  %v1758 = vadd.f32 %v1749, %v645
  %v1759 = vadd.f32 %v1750, %v648
  %v1760 = vadd.f32 %v1751, %v651
  %v1761 = vmax.f32 %v1758, 0.0
  %v1762 = vmax.f32 %v1759, 0.0
  %v1763 = vmax.f32 %v1760, 0.0
  %s1764 = scalar_lea.vmem %s10, 16
  %1765 = vst [vmem:[%s1764 - $0x2] sm:$0xfc] %v1761
  %1766 = vst [vmem:[%s1764 + $0x6] sm:$0xff] %v1762
  %1767 = vst [vmem:[%s1764 + $0xe] sm:$0x3] %v1763
  // Predicated region
  $region42: #{residual_block.1} parent=0 // pred_check
    _
  $region43: #{residual_block.1} parent=0 // pred_check_branch
    %1769 = sbr.rel (0) target = $region45
  $region44: #{residual_block.1} parent=0 // pred_region
    _
  $region45: #{residual_block.1} parent=0 // pred_fallthru
    _
  // Predicated region
  $region46: #{residual_block.1} parent=0 // pred_check
    _
  $region47: #{residual_block.1} parent=0 // pred_check_branch
    %1771 = sbr.rel (0) target = $region49
  $region48: #{residual_block.1} parent=0 // pred_region
    _
  $region49: #{residual_block.1} parent=0 // pred_fallthru
    _

</llo_original>
